<compile_context>
chip_gen: v7x
topology: tpu7x:2x2x1
jax: 0.10.0
libtpu: 0.0.40
codegen_flags: <defaults>
</compile_context>

<pallas_src>
import numpy as np
import jax
import jax.numpy as jnp
from jax.experimental import pallas as pl
from jax.experimental.pallas import tpu as pltpu

NUM_QUBITS = 4
DIM = 1 << NUM_QUBITS          # 16
TB = 256                       # batch lanes per grid step (2 lane tiles; multi-step grid for big batches)
PAIRS = [(0, 1), (0, 2), (0, 3), (1, 2), (1, 3), (2, 3)]
PI = float(np.pi)


# ----------------------------------------------------------------------------
# Constant construction (plain numpy glue; build ONCE per theta and reuse —
# hoisted out of the per-call forward path).
# ----------------------------------------------------------------------------
def _single_qubit_op(u, q):
    """Full 16x16 matrix for single-qubit gate `u` on qubit `q` (little-endian)."""
    m = np.array([[1.0]])
    for qq in reversed(range(NUM_QUBITS)):     # qubit 3 is the leftmost kron factor
        m = np.kron(m, u if qq == q else np.eye(2))
    return m


def _cx_op(c, t):
    m = np.zeros((DIM, DIM))
    for k in range(DIM):
        j = k ^ (1 << t) if (k >> c) & 1 else k
        m[j, k] = 1.0
    return m


def _ry(theta):
    c, s = np.cos(theta / 2.0), np.sin(theta / 2.0)
    return np.array([[c, -s], [s, c]])


def _ansatz_matrix(theta):
    """RealAmplitudes(4, reps=1) unitary A (real 16x16), column-vector convention."""
    theta = np.asarray(theta, dtype=np.float64)
    ry1 = np.eye(DIM)
    ry2 = np.eye(DIM)
    for q in range(NUM_QUBITS):
        ry1 = _single_qubit_op(_ry(theta[q]), q) @ ry1
        ry2 = _single_qubit_op(_ry(theta[NUM_QUBITS + q]), q) @ ry2
    cx_chain = _cx_op(0, 1) @ _cx_op(1, 2) @ _cx_op(2, 3)   # reverse-linear == 'full' for CX
    return ry2 @ cx_chain @ ry1


def build_constants(theta):
    """Returns (cmat (16,42) f32, pmat (2,16) f32).  cmat = [0.25*H^x4 | A | phase-selector]."""
    a = _ansatz_matrix(theta)                                # (16,16)

    # 0.25 * H^{x4}: H^x4 already carries 1/4; the extra 1/4 is the first-rep amplitude
    # folded in so the kernel never multiplies by 0.25 explicitly.
    heff = np.empty((DIM, DIM))
    for j in range(DIM):
        for k in range(DIM):
            heff[j, k] = 0.0625 * ((-1.0) ** bin(j & k).count("1"))

    # Phase selector (16, 10): cols 0..3 -> 2*bit_i(k)  (P(2*x_i));
    #                          cols 4..9 -> 2*(bit_i(k) xor bit_j(k))  (CX-P-CX pair block)
    msel = np.zeros((DIM, NUM_QUBITS + len(PAIRS)))
    for k in range(DIM):
        for i in range(NUM_QUBITS):
            msel[k, i] = 2.0 * ((k >> i) & 1)
        for p, (i, j) in enumerate(PAIRS):
            msel[k, NUM_QUBITS + p] = 2.0 * (((k >> i) & 1) ^ ((k >> j) & 1))

    # Parity readout (2, 16): out = P @ probs
    pmat = np.zeros((2, DIM))
    for k in range(DIM):
        pmat[bin(k).count("1") % 2, k] = 1.0

    cmat = np.concatenate([heff, a, msel], axis=1)           # (16, 16+16+10) = (16, 42)
    return jnp.asarray(cmat, jnp.float32), jnp.asarray(pmat, jnp.float32)


# ----------------------------------------------------------------------------
# Pallas kernel: full statevector simulation for one lane-tile of the batch
# ----------------------------------------------------------------------------
def qnn_kernel(x_ref, cmat_ref, pmat_ref, out_ref):
    f32 = jnp.float32
    x = x_ref[...]                       # (4, TB)   features, batch on lanes
    px = PI - x                          # (4, TB)   (pi - x_i)

    heff = cmat_ref[:, 0:DIM]            # (16, 16)  0.25 * H^{x4}
    amat = cmat_ref[:, DIM:2 * DIM]      # (16, 16)  RealAmplitudes unitary
    moff = 2 * DIM                       # start of the (16, 10) phase selector

    # Diagonal ZZFeatureMap phase, built on the VPU with outer-product FMAs
    # (static lane/sublane slices + broadcasts; keeps the MXU free for H / A).
    # phase[k, b] = sum_i 2*x_i*bit_i(k) + sum_{i<j} 2*(pi-x_i)(pi-x_j)*(bit_i(k)^bit_j(k))
    phase = cmat_ref[:, moff:moff + 1] * x[0:1, :]
    for i in range(1, NUM_QUBITS):
        phase = phase + cmat_ref[:, moff + i:moff + i + 1] * x[i:i + 1, :]
    for p, (i, j) in enumerate(PAIRS):
        col = moff + NUM_QUBITS + p
        phase = phase + cmat_ref[:, col:col + 1] * (px[i:i + 1, :] * px[j:j + 1, :])

    c = jnp.cos(phase)                   # (16, TB)  EUP transcendentals — the arch floor
    s = jnp.sin(phase)

    # state after first [H ; phase] rep is 0.25*exp(i*phase); apply second rep:
    # H^x4 (with the 0.25 folded into heff) then the same diagonal phase layer.
    re = jnp.dot(heff, c, preferred_element_type=f32)        # (16, TB)
    im = jnp.dot(heff, s, preferred_element_type=f32)
    re2 = c * re - s * im
    im2 = s * re + c * im

    # ansatz (real 16x16 unitary), column convention: psi' = A @ psi
    re3 = jnp.dot(amat, re2, preferred_element_type=f32)
    im3 = jnp.dot(amat, im2, preferred_element_type=f32)

    probs = re3 * re3 + im3 * im3        # (16, TB) measurement probabilities
    out_ref[...] = jnp.dot(pmat_ref[...], probs, preferred_element_type=f32)   # (2, TB)


# ----------------------------------------------------------------------------
# Wrapper (constants are built once per theta via build_constants and reused)
# ----------------------------------------------------------------------------
@jax.jit
def qnn_forward(x, cmat, pmat):
    x = jnp.asarray(x, dtype=jnp.float32)
    B = x.shape[0]
    Bp = ((B + TB - 1) // TB) * TB
    # Transpose once: batch on the lane axis, zero-pad to a multiple of TB lanes.
    xt = jnp.zeros((NUM_QUBITS, Bp), jnp.float32).at[:, :B].set(x.T)

    out = pl.pallas_call(
        qnn_kernel,
        out_shape=jax.ShapeDtypeStruct((2, Bp), jnp.float32),
        grid=(Bp // TB,),
        in_specs=[
            pl.BlockSpec((NUM_QUBITS, TB), lambda i: (0, i)),      # x tile (batch on lanes)
            pl.BlockSpec((DIM, 2 * DIM + 10), lambda i: (0, 0)),   # packed [Heff | A | selector]
            pl.BlockSpec((2, DIM), lambda i: (0, 0)),              # parity readout
        ],
        out_specs=pl.BlockSpec((2, TB), lambda i: (0, i)),
        compiler_params=pltpu.CompilerParams(dimension_semantics=("parallel",)),
    )(xt, cmat, pmat)
    return out[:, :B].T                  # (B, 2)


# ----------------------------------------------------------------------------
# Pure-numpy float64 reference (exact statevector sim) for correctness checking
# ----------------------------------------------------------------------------
def qnn_reference(x, theta):
    x = np.asarray(x, dtype=np.float64)
    a = _ansatz_matrix(theta)
    h4 = np.array([[0.25 * ((-1.0) ** bin(j & k).count("1")) for k in range(DIM)]
                   for j in range(DIM)])
    out = np.zeros((x.shape[0], 2))
    for b in range(x.shape[0]):
        xb = x[b]
        phase = np.zeros(DIM)
        for k in range(DIM):
            ph = 0.0
            for i in range(NUM_QUBITS):
                ph += 2.0 * xb[i] * ((k >> i) & 1)
            for (i, j) in PAIRS:
                ph += 2.0 * (np.pi - xb[i]) * (np.pi - xb[j]) * (((k >> i) & 1) ^ ((k >> j) & 1))
            phase[k] = ph
        psi = 0.25 * np.exp(1j * phase)            # first [H ; phase] rep
        psi = np.exp(1j * phase) * (h4 @ psi)      # second rep
        psi = a @ psi                              # ansatz
        p = np.abs(psi) ** 2
        for k in range(DIM):
            out[b, bin(k).count("1") % 2] += p[k]
    return out


if __name__ == "__main__":
    key = jax.random.PRNGKey(0)
    kx, kw = jax.random.split(key)
    batch = 8                                          # small demo batch (pads to one TB tile)
    x = jax.random.uniform(kx, (batch, NUM_QUBITS), minval=0.0, maxval=2.0 * np.pi,
                           dtype=jnp.float32)
    # TorchConnector default: weights ~ U(-1, 1); (reps+1)*num_qubits = 8 params
    theta = jax.random.uniform(kw, (2 * NUM_QUBITS,), minval=-1.0, maxval=1.0,
                               dtype=jnp.float32)

    cmat, pmat = build_constants(np.asarray(theta))    # hoisted: built once, reused per call
    out = qnn_forward(x, cmat, pmat)
    out = jax.block_until_ready(out)

    out_np = np.asarray(out)
    assert out_np.shape == (batch, 2), out_np.shape
    # probabilities of the two parity classes must sum to 1 per sample, be non-negative,
    # and match the exact float64 statevector reference
    assert np.allclose(out_np.sum(axis=-1), 1.0, atol=1e-3), out_np
    assert np.all(out_np >= -1e-5), out_np
    ref = qnn_reference(np.asarray(x), np.asarray(theta))
    assert np.allclose(out_np, ref, atol=1e-2), (out_np, ref)
    print("KERNEL_OK")
</pallas_src>

<mosaic_0001>
module attributes {stable_mosaic.version = 11 : i64} {
  func.func @qnn_kernel(%arg0: i32, %arg1: memref<4x256xf32, #tpu.memory_space<vmem>>, %arg2: memref<16x42xf32, #tpu.memory_space<vmem>>, %arg3: memref<2x16xf32, #tpu.memory_space<vmem>>, %arg4: memref<2x256xf32, #tpu.memory_space<vmem>>) attributes {dimension_semantics = [#tpu.dimension_semantics<parallel>], iteration_bounds = array<i64: 1>, scalar_prefetch = 0 : i64, scratch_operands = 0 : i64, tpu.core_type = #tpu.core_type<tc>, window_params = [{transform_indices = @transform_0, window_bounds = array<i64: 4, 256>}, {pipeline_mode = #tpu.pipeline_mode<synchronous>, transform_indices = @transform_1, window_bounds = array<i64: 16, 42>}, {pipeline_mode = #tpu.pipeline_mode<synchronous>, transform_indices = @transform_2, window_bounds = array<i64: 2, 16>}, {transform_indices = @transform_3, window_bounds = array<i64: 2, 256>}]} {
    %c0 = arith.constant 0 : index
    %c0_0 = arith.constant 0 : index
    %0 = vector.load %arg1[%c0, %c0_0] : memref<4x256xf32, #tpu.memory_space<vmem>>, vector<4x256xf32>
    %cst = arith.constant 3.14159274 : f32
    %1 = vector.broadcast %cst : f32 to vector<4x256xf32>
    %2 = arith.subf %1, %0 : vector<4x256xf32>
    %c0_1 = arith.constant 0 : index
    %c0_2 = arith.constant 0 : index
    %3 = vector.load %arg2[%c0_1, %c0_2] : memref<16x42xf32, #tpu.memory_space<vmem>>, vector<16x16xf32>
    %c0_3 = arith.constant 0 : index
    %c16 = arith.constant 16 : index
    %4 = vector.load %arg2[%c0_3, %c16] : memref<16x42xf32, #tpu.memory_space<vmem>>, vector<16x16xf32>
    %c0_4 = arith.constant 0 : index
    %c32 = arith.constant 32 : index
    %5 = vector.load %arg2[%c0_4, %c32] : memref<16x42xf32, #tpu.memory_space<vmem>>, vector<16x1xf32>
    %6 = vector.extract_strided_slice %0 {offsets = [0, 0], sizes = [1, 256], strides = [1, 1]} : vector<4x256xf32> to vector<1x256xf32>
    %7 = vector.broadcast %5 : vector<16x1xf32> to vector<16x256xf32>
    %8 = vector.broadcast %6 : vector<1x256xf32> to vector<16x256xf32>
    %9 = arith.mulf %7, %8 : vector<16x256xf32>
    %c0_5 = arith.constant 0 : index
    %c33 = arith.constant 33 : index
    %10 = vector.load %arg2[%c0_5, %c33] : memref<16x42xf32, #tpu.memory_space<vmem>>, vector<16x1xf32>
    %11 = vector.extract_strided_slice %0 {offsets = [1, 0], sizes = [1, 256], strides = [1, 1]} : vector<4x256xf32> to vector<1x256xf32>
    %12 = vector.broadcast %10 : vector<16x1xf32> to vector<16x256xf32>
    %13 = vector.broadcast %11 : vector<1x256xf32> to vector<16x256xf32>
    %14 = arith.mulf %12, %13 : vector<16x256xf32>
    %15 = arith.addf %9, %14 : vector<16x256xf32>
    %c0_6 = arith.constant 0 : index
    %c34 = arith.constant 34 : index
    %16 = vector.load %arg2[%c0_6, %c34] : memref<16x42xf32, #tpu.memory_space<vmem>>, vector<16x1xf32>
    %17 = vector.extract_strided_slice %0 {offsets = [2, 0], sizes = [1, 256], strides = [1, 1]} : vector<4x256xf32> to vector<1x256xf32>
    %18 = vector.broadcast %16 : vector<16x1xf32> to vector<16x256xf32>
    %19 = vector.broadcast %17 : vector<1x256xf32> to vector<16x256xf32>
    %20 = arith.mulf %18, %19 : vector<16x256xf32>
    %21 = arith.addf %15, %20 : vector<16x256xf32>
    %c0_7 = arith.constant 0 : index
    %c35 = arith.constant 35 : index
    %22 = vector.load %arg2[%c0_7, %c35] : memref<16x42xf32, #tpu.memory_space<vmem>>, vector<16x1xf32>
    %23 = vector.extract_strided_slice %0 {offsets = [3, 0], sizes = [1, 256], strides = [1, 1]} : vector<4x256xf32> to vector<1x256xf32>
    %24 = vector.broadcast %22 : vector<16x1xf32> to vector<16x256xf32>
    %25 = vector.broadcast %23 : vector<1x256xf32> to vector<16x256xf32>
    %26 = arith.mulf %24, %25 : vector<16x256xf32>
    %27 = arith.addf %21, %26 : vector<16x256xf32>
    %c0_8 = arith.constant 0 : index
    %c36 = arith.constant 36 : index
    %28 = vector.load %arg2[%c0_8, %c36] : memref<16x42xf32, #tpu.memory_space<vmem>>, vector<16x1xf32>
    %29 = vector.extract_strided_slice %2 {offsets = [0, 0], sizes = [1, 256], strides = [1, 1]} : vector<4x256xf32> to vector<1x256xf32>
    %30 = vector.extract_strided_slice %2 {offsets = [1, 0], sizes = [1, 256], strides = [1, 1]} : vector<4x256xf32> to vector<1x256xf32>
    %31 = arith.mulf %29, %30 : vector<1x256xf32>
    %32 = vector.broadcast %28 : vector<16x1xf32> to vector<16x256xf32>
    %33 = vector.broadcast %31 : vector<1x256xf32> to vector<16x256xf32>
    %34 = arith.mulf %32, %33 : vector<16x256xf32>
    %35 = arith.addf %27, %34 : vector<16x256xf32>
    %c0_9 = arith.constant 0 : index
    %c37 = arith.constant 37 : index
    %36 = vector.load %arg2[%c0_9, %c37] : memref<16x42xf32, #tpu.memory_space<vmem>>, vector<16x1xf32>
    %37 = vector.extract_strided_slice %2 {offsets = [0, 0], sizes = [1, 256], strides = [1, 1]} : vector<4x256xf32> to vector<1x256xf32>
    %38 = vector.extract_strided_slice %2 {offsets = [2, 0], sizes = [1, 256], strides = [1, 1]} : vector<4x256xf32> to vector<1x256xf32>
    %39 = arith.mulf %37, %38 : vector<1x256xf32>
    %40 = vector.broadcast %36 : vector<16x1xf32> to vector<16x256xf32>
    %41 = vector.broadcast %39 : vector<1x256xf32> to vector<16x256xf32>
    %42 = arith.mulf %40, %41 : vector<16x256xf32>
    %43 = arith.addf %35, %42 : vector<16x256xf32>
    %c0_10 = arith.constant 0 : index
    %c38 = arith.constant 38 : index
    %44 = vector.load %arg2[%c0_10, %c38] : memref<16x42xf32, #tpu.memory_space<vmem>>, vector<16x1xf32>
    %45 = vector.extract_strided_slice %2 {offsets = [0, 0], sizes = [1, 256], strides = [1, 1]} : vector<4x256xf32> to vector<1x256xf32>
    %46 = vector.extract_strided_slice %2 {offsets = [3, 0], sizes = [1, 256], strides = [1, 1]} : vector<4x256xf32> to vector<1x256xf32>
    %47 = arith.mulf %45, %46 : vector<1x256xf32>
    %48 = vector.broadcast %44 : vector<16x1xf32> to vector<16x256xf32>
    %49 = vector.broadcast %47 : vector<1x256xf32> to vector<16x256xf32>
    %50 = arith.mulf %48, %49 : vector<16x256xf32>
    %51 = arith.addf %43, %50 : vector<16x256xf32>
    %c0_11 = arith.constant 0 : index
    %c39 = arith.constant 39 : index
    %52 = vector.load %arg2[%c0_11, %c39] : memref<16x42xf32, #tpu.memory_space<vmem>>, vector<16x1xf32>
    %53 = vector.extract_strided_slice %2 {offsets = [1, 0], sizes = [1, 256], strides = [1, 1]} : vector<4x256xf32> to vector<1x256xf32>
    %54 = vector.extract_strided_slice %2 {offsets = [2, 0], sizes = [1, 256], strides = [1, 1]} : vector<4x256xf32> to vector<1x256xf32>
    %55 = arith.mulf %53, %54 : vector<1x256xf32>
    %56 = vector.broadcast %52 : vector<16x1xf32> to vector<16x256xf32>
    %57 = vector.broadcast %55 : vector<1x256xf32> to vector<16x256xf32>
    %58 = arith.mulf %56, %57 : vector<16x256xf32>
    %59 = arith.addf %51, %58 : vector<16x256xf32>
    %c0_12 = arith.constant 0 : index
    %c40 = arith.constant 40 : index
    %60 = vector.load %arg2[%c0_12, %c40] : memref<16x42xf32, #tpu.memory_space<vmem>>, vector<16x1xf32>
    %61 = vector.extract_strided_slice %2 {offsets = [1, 0], sizes = [1, 256], strides = [1, 1]} : vector<4x256xf32> to vector<1x256xf32>
    %62 = vector.extract_strided_slice %2 {offsets = [3, 0], sizes = [1, 256], strides = [1, 1]} : vector<4x256xf32> to vector<1x256xf32>
    %63 = arith.mulf %61, %62 : vector<1x256xf32>
    %64 = vector.broadcast %60 : vector<16x1xf32> to vector<16x256xf32>
    %65 = vector.broadcast %63 : vector<1x256xf32> to vector<16x256xf32>
    %66 = arith.mulf %64, %65 : vector<16x256xf32>
    %67 = arith.addf %59, %66 : vector<16x256xf32>
    %c0_13 = arith.constant 0 : index
    %c41 = arith.constant 41 : index
    %68 = vector.load %arg2[%c0_13, %c41] : memref<16x42xf32, #tpu.memory_space<vmem>>, vector<16x1xf32>
    %69 = vector.extract_strided_slice %2 {offsets = [2, 0], sizes = [1, 256], strides = [1, 1]} : vector<4x256xf32> to vector<1x256xf32>
    %70 = vector.extract_strided_slice %2 {offsets = [3, 0], sizes = [1, 256], strides = [1, 1]} : vector<4x256xf32> to vector<1x256xf32>
    %71 = arith.mulf %69, %70 : vector<1x256xf32>
    %72 = vector.broadcast %68 : vector<16x1xf32> to vector<16x256xf32>
    %73 = vector.broadcast %71 : vector<1x256xf32> to vector<16x256xf32>
    %74 = arith.mulf %72, %73 : vector<16x256xf32>
    %75 = arith.addf %67, %74 : vector<16x256xf32>
    %76 = math.cos %75 : vector<16x256xf32>
    %77 = math.sin %75 : vector<16x256xf32>
    %cst_14 = arith.constant dense<0.000000e+00> : vector<16x256xf32>
    %78 = tpu.matmul %3, %76, %cst_14 {dimension_numbers = #tpu.dot_dimension_numbers<[1], [0], [0], [1], [0, 0, 1, 1], [], []>} : vector<16x16xf32>, vector<16x256xf32>, vector<16x256xf32> -> vector<16x256xf32>
    %cst_15 = arith.constant dense<0.000000e+00> : vector<16x256xf32>
    %79 = tpu.matmul %3, %77, %cst_15 {dimension_numbers = #tpu.dot_dimension_numbers<[1], [0], [0], [1], [0, 0, 1, 1], [], []>} : vector<16x16xf32>, vector<16x256xf32>, vector<16x256xf32> -> vector<16x256xf32>
    %80 = arith.mulf %76, %78 : vector<16x256xf32>
    %81 = arith.mulf %77, %79 : vector<16x256xf32>
    %82 = arith.subf %80, %81 : vector<16x256xf32>
    %83 = arith.mulf %77, %78 : vector<16x256xf32>
    %84 = arith.mulf %76, %79 : vector<16x256xf32>
    %85 = arith.addf %83, %84 : vector<16x256xf32>
    %cst_16 = arith.constant dense<0.000000e+00> : vector<16x256xf32>
    %86 = tpu.matmul %4, %82, %cst_16 {dimension_numbers = #tpu.dot_dimension_numbers<[1], [0], [0], [1], [0, 0, 1, 1], [], []>} : vector<16x16xf32>, vector<16x256xf32>, vector<16x256xf32> -> vector<16x256xf32>
    %cst_17 = arith.constant dense<0.000000e+00> : vector<16x256xf32>
    %87 = tpu.matmul %4, %85, %cst_17 {dimension_numbers = #tpu.dot_dimension_numbers<[1], [0], [0], [1], [0, 0, 1, 1], [], []>} : vector<16x16xf32>, vector<16x256xf32>, vector<16x256xf32> -> vector<16x256xf32>
    %88 = arith.mulf %86, %86 : vector<16x256xf32>
    %89 = arith.mulf %87, %87 : vector<16x256xf32>
    %90 = arith.addf %88, %89 : vector<16x256xf32>
    %c0_18 = arith.constant 0 : index
    %c0_19 = arith.constant 0 : index
    %91 = vector.load %arg3[%c0_18, %c0_19] : memref<2x16xf32, #tpu.memory_space<vmem>>, vector<2x16xf32>
    %cst_20 = arith.constant dense<0.000000e+00> : vector<2x256xf32>
    %92 = tpu.matmul %91, %90, %cst_20 {dimension_numbers = #tpu.dot_dimension_numbers<[1], [0], [0], [1], [0, 0, 1, 1], [], []>} : vector<2x16xf32>, vector<16x256xf32>, vector<2x256xf32> -> vector<2x256xf32>
    %c0_21 = arith.constant 0 : index
    %c0_22 = arith.constant 0 : index
    %93 = vector.load %arg4[%c0_21, %c0_22] : memref<2x256xf32, #tpu.memory_space<vmem>>, vector<2x256xf32>
    tpu.vector_store %arg4[%c0_21, %c0_22], %92 {strides = array<i32>} : memref<2x256xf32, #tpu.memory_space<vmem>>, vector<2x256xf32>,
    return
  }
  func.func @transform_0(%arg0: i32) -> (i32, i32) {
    %c0_i32 = arith.constant 0 : i32
    %c0_i32_0 = arith.constant 0 : i32
    return %c0_i32, %arg0 : i32, i32
  }
  func.func @transform_1(%arg0: i32) -> (i32, i32) {
    %c0_i32 = arith.constant 0 : i32
    %c0_i32_0 = arith.constant 0 : i32
    %c0_i32_1 = arith.constant 0 : i32
    return %c0_i32, %c0_i32_0 : i32, i32
  }
  func.func @transform_2(%arg0: i32) -> (i32, i32) {
    %c0_i32 = arith.constant 0 : i32
    %c0_i32_0 = arith.constant 0 : i32
    %c0_i32_1 = arith.constant 0 : i32
    return %c0_i32, %c0_i32_0 : i32, i32
  }
  func.func @transform_3(%arg0: i32) -> (i32, i32) {
    %c0_i32 = arith.constant 0 : i32
    %c0_i32_0 = arith.constant 0 : i32
    return %c0_i32, %arg0 : i32, i32
  }
}

</mosaic_0001>

<llo_original>
// kernel: qnn_forward.1
$region0: #{qnn_forward.1}
  #allocation0 [shape = 'u32[]', space=smem, size = 0x4, offset = 0x4, fixed_abs, tag = 'smem constant byte address 0x4 - core index']
  #allocation1 [shape = 'u32[144,128]{1,0:T(1,128)}', space=vmem, size = 0x12000, scoped, tag = 'internal scratch']
  %s0 = inlined_call_operand.vmem [shape: f32[4,256], index: 0, kind: input, shape index: {}]
  %s1 = inlined_call_operand.vmem [shape: f32[16,42], index: 1, kind: input, shape index: {}]
  %s2 = inlined_call_operand.vmem [shape: f32[2,16], index: 2, kind: input, shape index: {}]
  %s3 = inlined_call_operand.vmem [shape: f32[2,256], index: 3, kind: output, shape index: {}]
  %s4 = sld [smem:[#allocation0]]
  $region22: #{qnn_forward.1} parent=0
    _
  %s6 = ssub.s32 1, %s4
  %s7 = scalar_select 0, %s6, %s4
  // Predicated region
  $region2: #{qnn_forward.1} parent=0 // pred_check
    _
  $region3: #{qnn_forward.1} parent=0 // pred_check_branch
    %9 = sbr.rel (0) target = $region5
  $region4: #{qnn_forward.1} parent=0 // pred_region
    _
  $region5: #{qnn_forward.1} parent=0 // pred_fallthru
    _
  // Predicated region
  $region6: #{qnn_forward.1} parent=0 // pred_check
    _
  $region7: #{qnn_forward.1} parent=0 // pred_check_branch
    %11 = sbr.rel (0) target = $region9
  $region8: #{qnn_forward.1} parent=0 // pred_region
    _
  $region9: #{qnn_forward.1} parent=0 // pred_fallthru
    _
  // Predicated region
  $region10: #{qnn_forward.1} parent=0 // pred_check
    _
  $region11: #{qnn_forward.1} parent=0 // pred_check_branch
    %13 = sbr.rel (0) target = $region13
  $region12: #{qnn_forward.1} parent=0 // pred_region
    _
  $region13: #{qnn_forward.1} parent=0 // pred_fallthru
    _
  %v14 = vld [vmem:[%s0] sm:$0xff]
  %v15 = vsub.f32 3.1415927, %v14
  %v16 = vld [vmem:[%s1] sm:$0xff]
  %v17 = vld [vmem:[%s1 + $0x8] sm:$0xff]
  %19 = vset.pattern.permute.xlu0 32
  %20 = vperm.xlu0 %19, %v16
  %v21 = vpop.permute.xlu0 %20
  %24 = vset.pattern.permute.xlu0 32
  %25 = vperm.xlu0 %24, %v17
  %v26 = vpop.permute.xlu0 %25
  %v29 = vlaneseq
  %v30 = vshrl.u32 %v29, 7
  %v31 = vsub.s32 0, %v30
  %v32 = vrot.slane %v14, %v31
  %v33 = vlaneseq
  %v34 = vshrl.u32 %v33, 7
  %v35 = vsub.s32 4, %v34
  %v36 = vrot.slane %v14, %v35
  %v39 = vlaneseq
  %v40 = vshrl.u32 %v39, 7
  %v41 = vsub.s32 0, %v40
  %v42 = vrot.slane %v32, %v41
  %v43 = vlaneseq
  %v44 = vshrl.u32 %v43, 7
  %v45 = vsub.s32 0, %v44
  %v46 = vrot.slane %v36, %v45
  %v47 = vmul.f32 %v21, %v42
  %v48 = vmul.f32 %v21, %v46
  %v49 = vmul.f32 %v26, %v42
  %v50 = vmul.f32 %v26, %v46
  %51 = vset.pattern.permute.xlu0 33
  %52 = vperm.xlu0 %51, %v16
  %v53 = vpop.permute.xlu0 %52
  %55 = vset.pattern.permute.xlu0 33
  %56 = vperm.xlu0 %55, %v17
  %v57 = vpop.permute.xlu0 %56
  %v59 = vlaneseq
  %v60 = vshrl.u32 %v59, 7
  %v61 = vsub.s32 1, %v60
  %v62 = vrot.slane %v14, %v61
  %v63 = vlaneseq
  %v64 = vshrl.u32 %v63, 7
  %v65 = vsub.s32 5, %v64
  %v66 = vrot.slane %v14, %v65
  %v69 = vlaneseq
  %v70 = vshrl.u32 %v69, 7
  %v71 = vsub.s32 1, %v70
  %v72 = vrot.slane %v62, %v71
  %v73 = vlaneseq
  %v74 = vshrl.u32 %v73, 7
  %v75 = vsub.s32 1, %v74
  %v76 = vrot.slane %v66, %v75
  %v77 = vmul.f32 %v53, %v72
  %v78 = vmul.f32 %v53, %v76
  %v79 = vmul.f32 %v57, %v72
  %v80 = vmul.f32 %v57, %v76
  %v81 = vadd.f32 %v47, %v77
  %v82 = vadd.f32 %v48, %v78
  %v83 = vadd.f32 %v49, %v79
  %v84 = vadd.f32 %v50, %v80
  %85 = vset.pattern.permute.xlu0 34
  %86 = vperm.xlu0 %85, %v16
  %v87 = vpop.permute.xlu0 %86
  %89 = vset.pattern.permute.xlu0 34
  %90 = vperm.xlu0 %89, %v17
  %v91 = vpop.permute.xlu0 %90
  %v93 = vlaneseq
  %v94 = vshrl.u32 %v93, 7
  %v95 = vsub.s32 2, %v94
  %v96 = vrot.slane %v14, %v95
  %v97 = vlaneseq
  %v98 = vshrl.u32 %v97, 7
  %v99 = vsub.s32 6, %v98
  %v100 = vrot.slane %v14, %v99
  %v103 = vlaneseq
  %v104 = vshrl.u32 %v103, 7
  %v105 = vsub.s32 2, %v104
  %v106 = vrot.slane %v96, %v105
  %v107 = vlaneseq
  %v108 = vshrl.u32 %v107, 7
  %v109 = vsub.s32 2, %v108
  %v110 = vrot.slane %v100, %v109
  %v111 = vmul.f32 %v87, %v106
  %v112 = vmul.f32 %v87, %v110
  %v113 = vmul.f32 %v91, %v106
  %v114 = vmul.f32 %v91, %v110
  %v115 = vadd.f32 %v81, %v111
  %v116 = vadd.f32 %v82, %v112
  %v117 = vadd.f32 %v83, %v113
  %v118 = vadd.f32 %v84, %v114
  %119 = vset.pattern.permute.xlu0 35
  %120 = vperm.xlu0 %119, %v16
  %v121 = vpop.permute.xlu0 %120
  %123 = vset.pattern.permute.xlu0 35
  %124 = vperm.xlu0 %123, %v17
  %v125 = vpop.permute.xlu0 %124
  %v127 = vlaneseq
  %v128 = vshrl.u32 %v127, 7
  %v129 = vsub.s32 3, %v128
  %v130 = vrot.slane %v14, %v129
  %v131 = vlaneseq
  %v132 = vshrl.u32 %v131, 7
  %v133 = vsub.s32 7, %v132
  %v134 = vrot.slane %v14, %v133
  %v137 = vlaneseq
  %v138 = vshrl.u32 %v137, 7
  %v139 = vsub.s32 3, %v138
  %v140 = vrot.slane %v130, %v139
  %v141 = vlaneseq
  %v142 = vshrl.u32 %v141, 7
  %v143 = vsub.s32 3, %v142
  %v144 = vrot.slane %v134, %v143
  %v145 = vmul.f32 %v121, %v140
  %v146 = vmul.f32 %v121, %v144
  %v147 = vmul.f32 %v125, %v140
  %v148 = vmul.f32 %v125, %v144
  %v149 = vadd.f32 %v115, %v145
  %v150 = vadd.f32 %v116, %v146
  %v151 = vadd.f32 %v117, %v147
  %v152 = vadd.f32 %v118, %v148
  %v154 = vrot.slane %v15, 5
  %v155 = vrot.slane %v154, 4
  %v157 = vmul.f32 %v15, %v155
  %158 = vset.pattern.permute.xlu0 36
  %159 = vperm.xlu0 %158, %v16
  %v160 = vpop.permute.xlu0 %159
  %162 = vset.pattern.permute.xlu0 36
  %163 = vperm.xlu0 %162, %v17
  %v164 = vpop.permute.xlu0 %163
  %v167 = vlaneseq
  %v168 = vshrl.u32 %v167, 7
  %v169 = vsub.s32 0, %v168
  %v170 = vrot.slane %v157, %v169
  %v171 = vlaneseq
  %v172 = vshrl.u32 %v171, 7
  %v173 = vsub.s32 4, %v172
  %v174 = vrot.slane %v157, %v173
  %v177 = vlaneseq
  %v178 = vshrl.u32 %v177, 7
  %v179 = vsub.s32 0, %v178
  %v180 = vrot.slane %v170, %v179
  %v181 = vlaneseq
  %v182 = vshrl.u32 %v181, 7
  %v183 = vsub.s32 0, %v182
  %v184 = vrot.slane %v174, %v183
  %v185 = vmul.f32 %v160, %v180
  %v186 = vmul.f32 %v160, %v184
  %v187 = vmul.f32 %v164, %v180
  %v188 = vmul.f32 %v164, %v184
  %v189 = vadd.f32 %v149, %v185
  %v190 = vadd.f32 %v150, %v186
  %v191 = vadd.f32 %v151, %v187
  %v192 = vadd.f32 %v152, %v188
  %v193 = vrot.slane %v15, 6
  %v194 = vrot.slane %v193, 4
  %v196 = vmul.f32 %v15, %v194
  %197 = vset.pattern.permute.xlu0 37
  %198 = vperm.xlu0 %197, %v16
  %v199 = vpop.permute.xlu0 %198
  %201 = vset.pattern.permute.xlu0 37
  %202 = vperm.xlu0 %201, %v17
  %v203 = vpop.permute.xlu0 %202
  %v206 = vlaneseq
  %v207 = vshrl.u32 %v206, 7
  %v208 = vsub.s32 0, %v207
  %v209 = vrot.slane %v196, %v208
  %v210 = vlaneseq
  %v211 = vshrl.u32 %v210, 7
  %v212 = vsub.s32 4, %v211
  %v213 = vrot.slane %v196, %v212
  %v216 = vlaneseq
  %v217 = vshrl.u32 %v216, 7
  %v218 = vsub.s32 0, %v217
  %v219 = vrot.slane %v209, %v218
  %v220 = vlaneseq
  %v221 = vshrl.u32 %v220, 7
  %v222 = vsub.s32 0, %v221
  %v223 = vrot.slane %v213, %v222
  %v224 = vmul.f32 %v199, %v219
  %v225 = vmul.f32 %v199, %v223
  %v226 = vmul.f32 %v203, %v219
  %v227 = vmul.f32 %v203, %v223
  %v228 = vadd.f32 %v189, %v224
  %v229 = vadd.f32 %v190, %v225
  %v230 = vadd.f32 %v191, %v226
  %v231 = vadd.f32 %v192, %v227
  %v232 = vrot.slane %v15, 7
  %v233 = vrot.slane %v232, 4
  %v235 = vmul.f32 %v15, %v233
  %236 = vset.pattern.permute.xlu0 38
  %237 = vperm.xlu0 %236, %v16
  %v238 = vpop.permute.xlu0 %237
  %240 = vset.pattern.permute.xlu0 38
  %241 = vperm.xlu0 %240, %v17
  %v242 = vpop.permute.xlu0 %241
  %v245 = vlaneseq
  %v246 = vshrl.u32 %v245, 7
  %v247 = vsub.s32 0, %v246
  %v248 = vrot.slane %v235, %v247
  %v249 = vlaneseq
  %v250 = vshrl.u32 %v249, 7
  %v251 = vsub.s32 4, %v250
  %v252 = vrot.slane %v235, %v251
  %v255 = vlaneseq
  %v256 = vshrl.u32 %v255, 7
  %v257 = vsub.s32 0, %v256
  %v258 = vrot.slane %v248, %v257
  %v259 = vlaneseq
  %v260 = vshrl.u32 %v259, 7
  %v261 = vsub.s32 0, %v260
  %v262 = vrot.slane %v252, %v261
  %v263 = vmul.f32 %v238, %v258
  %v264 = vmul.f32 %v238, %v262
  %v265 = vmul.f32 %v242, %v258
  %v266 = vmul.f32 %v242, %v262
  %v267 = vadd.f32 %v228, %v263
  %v268 = vadd.f32 %v229, %v264
  %v269 = vadd.f32 %v230, %v265
  %v270 = vadd.f32 %v231, %v266
  %271 = vset.pattern.permute.xlu0 39
  %272 = vperm.xlu0 %271, %v16
  %v273 = vpop.permute.xlu0 %272
  %275 = vset.pattern.permute.xlu0 39
  %276 = vperm.xlu0 %275, %v17
  %v277 = vpop.permute.xlu0 %276
  %v279 = vlaneseq
  %v280 = vshrl.u32 %v279, 7
  %v281 = vsub.s32 1, %v280
  %v282 = vrot.slane %v157, %v281
  %v283 = vlaneseq
  %v284 = vshrl.u32 %v283, 7
  %v285 = vsub.s32 5, %v284
  %v286 = vrot.slane %v157, %v285
  %v289 = vlaneseq
  %v290 = vshrl.u32 %v289, 7
  %v291 = vsub.s32 1, %v290
  %v292 = vrot.slane %v282, %v291
  %v293 = vlaneseq
  %v294 = vshrl.u32 %v293, 7
  %v295 = vsub.s32 1, %v294
  %v296 = vrot.slane %v286, %v295
  %v297 = vmul.f32 %v273, %v292
  %v298 = vmul.f32 %v273, %v296
  %v299 = vmul.f32 %v277, %v292
  %v300 = vmul.f32 %v277, %v296
  %v301 = vadd.f32 %v267, %v297
  %v302 = vadd.f32 %v268, %v298
  %v303 = vadd.f32 %v269, %v299
  %v304 = vadd.f32 %v270, %v300
  %305 = vset.pattern.permute.xlu0 40
  %306 = vperm.xlu0 %305, %v16
  %v307 = vpop.permute.xlu0 %306
  %309 = vset.pattern.permute.xlu0 40
  %310 = vperm.xlu0 %309, %v17
  %v311 = vpop.permute.xlu0 %310
  %v313 = vlaneseq
  %v314 = vshrl.u32 %v313, 7
  %v315 = vsub.s32 1, %v314
  %v316 = vrot.slane %v196, %v315
  %v317 = vlaneseq
  %v318 = vshrl.u32 %v317, 7
  %v319 = vsub.s32 5, %v318
  %v320 = vrot.slane %v196, %v319
  %v323 = vlaneseq
  %v324 = vshrl.u32 %v323, 7
  %v325 = vsub.s32 1, %v324
  %v326 = vrot.slane %v316, %v325
  %v327 = vlaneseq
  %v328 = vshrl.u32 %v327, 7
  %v329 = vsub.s32 1, %v328
  %v330 = vrot.slane %v320, %v329
  %v331 = vmul.f32 %v307, %v326
  %v332 = vmul.f32 %v307, %v330
  %v333 = vmul.f32 %v311, %v326
  %v334 = vmul.f32 %v311, %v330
  %v335 = vadd.f32 %v301, %v331
  %v336 = vadd.f32 %v302, %v332
  %v337 = vadd.f32 %v303, %v333
  %v338 = vadd.f32 %v304, %v334
  %339 = vset.pattern.permute.xlu0 41
  %340 = vperm.xlu0 %339, %v16
  %v341 = vpop.permute.xlu0 %340
  %343 = vset.pattern.permute.xlu0 41
  %344 = vperm.xlu0 %343, %v17
  %v345 = vpop.permute.xlu0 %344
  %v347 = vlaneseq
  %v348 = vshrl.u32 %v347, 7
  %v349 = vsub.s32 2, %v348
  %v350 = vrot.slane %v157, %v349
  %v351 = vlaneseq
  %v352 = vshrl.u32 %v351, 7
  %v353 = vsub.s32 6, %v352
  %v354 = vrot.slane %v157, %v353
  %v357 = vlaneseq
  %v358 = vshrl.u32 %v357, 7
  %v359 = vsub.s32 2, %v358
  %v360 = vrot.slane %v350, %v359
  %v361 = vlaneseq
  %v362 = vshrl.u32 %v361, 7
  %v363 = vsub.s32 2, %v362
  %v364 = vrot.slane %v354, %v363
  %v365 = vmul.f32 %v341, %v360
  %v366 = vmul.f32 %v341, %v364
  %v367 = vmul.f32 %v345, %v360
  %v368 = vmul.f32 %v345, %v364
  %v369 = vadd.f32 %v335, %v365
  %v370 = vadd.f32 %v336, %v366
  %v371 = vadd.f32 %v337, %v367
  %v372 = vadd.f32 %v338, %v368
  %v373 = vand.u32 2147483647, %v369
  %vm374 = vcmp.le.f32.partialorder %v373, 0.7853982
  %vm375 = vcmp.lt.s32.totalorder %v369, 0
  %v376 = vand.u32 %v369, 2139095040
  %v377 = vshrl.u32 %v376, 23
  %v378 = vsub.s32 %v377, 127
  %v379 = vand.u32 2147483647, %v369
  %v380 = vand.u32 %v379, 8388607
  %v381 = vor.u32 %v380, 8388608
  %v382 = vsub.s32 0, %v381
  %v383 = vadd.s32 %v378, 1
  %vm384 = vcmp.gt.s32.totalorder %v383, 0
  %v385 = vsel %vm384, %v383, 0
  %v386 = vshrl.u32 %v385, 5
  %v387 = vand.u32 %v385, 31
  %v388 = vsub.s32 32, %v387
  %v389 = vshrl.u32 683565275, %v388
  %v390 = vshll.u32 683565275, %v387
  %v391 = vshrl.u32 2475754826, %v388
  %v392 = vor.u32 %v390, %v391
  %v393 = vshll.u32 2475754826, %v387
  %v394 = vshrl.u32 2131351028, %v388
  %v395 = vor.u32 %v393, %v394
  %v396 = vshll.u32 2131351028, %v387
  %v397 = vshrl.u32 2102212464, %v388
  %v398 = vor.u32 %v396, %v397
  %v399 = vshll.u32 2102212464, %v387
  %v400 = vshrl.u32 920167782, %v388
  %v401 = vor.u32 %v399, %v400
  %v402 = vshll.u32 920167782, %v387
  %v403 = vshrl.u32 1326507024, %v388
  %v404 = vor.u32 %v402, %v403
  %vm405 = vcmp.lt.s32.totalorder %v386, 1
  %vm406 = vcmp.lt.s32.totalorder %v386, 2
  %vm407 = vcmp.lt.s32.totalorder %v386, 3
  %vm408 = vcmp.lt.s32.totalorder %v386, 4
  %v409 = vsel %vm405, %v389, %v392
  %v410 = vsel %vm408, %v398, 2102212464
  %v411 = vsel %vm407, %v395, %v410
  %v412 = vsel %vm406, %v409, %v411
  %v413 = vsel %vm405, %v392, %v395
  %v414 = vsel %vm408, %v401, 920167782
  %v415 = vsel %vm407, %v398, %v414
  %v416 = vsel %vm406, %v413, %v415
  %v417 = vsel %vm405, %v395, %v398
  %v418 = vsel %vm408, %v404, 1326507024
  %v419 = vsel %vm407, %v401, %v418
  %v420 = vsel %vm406, %v417, %v419
  %v421 = vshll.u32 %v381, 8
  %v422 = vmul.u32.u64.compose %v421, %v420
  %v423 = vextract.low.u32 %v422
  %v424 = vextract.high.u32 %v422
  %v425 = vmul.u32.u64.compose %v421, %v416
  %v426 = vextract.low.u32 %v425
  %v427 = vextract.high.u32 %v425
  %v428 = vmul.u32 %v421, %v412
  %v429 = vadd.s32 %v424, %v426
  %vm430 = vc.u32 %v424, %v426
  %v431 = vadd.s32 %v427, 1
  %v432 = vsel %vm430, %v431, %v427
  %v433 = vadd.s32 %v428, %v432
  %v434 = vadd.s32 %v433, 536870912
  %v435 = vshrl.u32 %v434, 30
  %v436 = vshll.u32 %v435, 30
  %v437 = vsub.s32 %v433, %v436
  %vm438 = vcmp.lt.s32.totalorder %v437, 0
  %v439 = vsub.s32 0, %v437
  %v440 = vsel %vm438, %v439, %v437
  %v441 = vclz %v440
  %v442 = vsub.s32 %v441, 2
  %vm443 = vcmp.gt.s32.totalorder 0, %v442
  %v444 = vsel %vm443, 0, %v442
  %v445 = vsub.s32 32, %v444
  %v446 = vshll.u32 %v437, %v444
  %v447 = vshrl.u32 %v429, %v445
  %v448 = vor.u32 %v446, %v447
  %v449 = vsub.s32 4294967266, %v444
  %v450 = vadd.s32 %v449, 127
  %v451 = vshll.u32 %v450, 23
  %v452 = vor.u32 4788187, %v451
  %v453 = vand.u32 2147483647, %v452
  %v455 = vcvt.s32.f32 %v448
  %v456 = vmul.f32 %v455, %v453
  %v457 = vxor.u32 %v456, 2147483648
  %v458 = vsel %vm375, %v457, %v456
  %v459 = vsub.s32 4, %v435
  %v460 = vsel %vm375, %v459, %v435
  %v461 = vsel %vm374, %v369, %v458
  %v462 = vsel %vm374, 0, %v460
  %v463 = vcosq.f32.pop %v461
  %v464 = vsinq.f32.pop %v461
  %vm465 = vweird.f32 %v369
  %v466 = vand.u32 %v462, 3
  %vm467 = vcmp.lt.s32.totalorder %v466, 2
  %vm468 = vcmp.eq.s32.totalorder %v466, 0
  %v469 = vxor.u32 %v464, 2147483648
  %v470 = vsel %vm468, %v463, %v469
  %vm471 = vcmp.eq.s32.totalorder %v466, 2
  %v472 = vxor.u32 %v463, 2147483648
  %v473 = vsel %vm471, %v472, %v464
  %v474 = vsel %vm467, %v470, %v473
  %v475 = vsel %vm465, nan, %v474
  %v476 = vand.u32 2147483647, %v370
  %vm477 = vcmp.le.f32.partialorder %v476, 0.7853982
  %vm478 = vcmp.lt.s32.totalorder %v370, 0
  %v479 = vand.u32 %v370, 2139095040
  %v480 = vshrl.u32 %v479, 23
  %v481 = vsub.s32 %v480, 127
  %v482 = vand.u32 2147483647, %v370
  %v483 = vand.u32 %v482, 8388607
  %v484 = vor.u32 %v483, 8388608
  %v485 = vsub.s32 0, %v484
  %v486 = vadd.s32 %v481, 1
  %vm487 = vcmp.gt.s32.totalorder %v486, 0
  %v488 = vsel %vm487, %v486, 0
  %v489 = vshrl.u32 %v488, 5
  %v490 = vand.u32 %v488, 31
  %v491 = vsub.s32 32, %v490
  %v492 = vshrl.u32 683565275, %v491
  %v493 = vshll.u32 683565275, %v490
  %v494 = vshrl.u32 2475754826, %v491
  %v495 = vor.u32 %v493, %v494
  %v496 = vshll.u32 2475754826, %v490
  %v497 = vshrl.u32 2131351028, %v491
  %v498 = vor.u32 %v496, %v497
  %v499 = vshll.u32 2131351028, %v490
  %v500 = vshrl.u32 2102212464, %v491
  %v501 = vor.u32 %v499, %v500
  %v502 = vshll.u32 2102212464, %v490
  %v503 = vshrl.u32 920167782, %v491
  %v504 = vor.u32 %v502, %v503
  %v505 = vshll.u32 920167782, %v490
  %v506 = vshrl.u32 1326507024, %v491
  %v507 = vor.u32 %v505, %v506
  %vm508 = vcmp.lt.s32.totalorder %v489, 1
  %vm509 = vcmp.lt.s32.totalorder %v489, 2
  %vm510 = vcmp.lt.s32.totalorder %v489, 3
  %vm511 = vcmp.lt.s32.totalorder %v489, 4
  %v512 = vsel %vm508, %v492, %v495
  %v513 = vsel %vm511, %v501, 2102212464
  %v514 = vsel %vm510, %v498, %v513
  %v515 = vsel %vm509, %v512, %v514
  %v516 = vsel %vm508, %v495, %v498
  %v517 = vsel %vm511, %v504, 920167782
  %v518 = vsel %vm510, %v501, %v517
  %v519 = vsel %vm509, %v516, %v518
  %v520 = vsel %vm508, %v498, %v501
  %v521 = vsel %vm511, %v507, 1326507024
  %v522 = vsel %vm510, %v504, %v521
  %v523 = vsel %vm509, %v520, %v522
  %v524 = vshll.u32 %v484, 8
  %v525 = vmul.u32.u64.compose %v524, %v523
  %v526 = vextract.low.u32 %v525
  %v527 = vextract.high.u32 %v525
  %v528 = vmul.u32.u64.compose %v524, %v519
  %v529 = vextract.low.u32 %v528
  %v530 = vextract.high.u32 %v528
  %v531 = vmul.u32 %v524, %v515
  %v532 = vadd.s32 %v527, %v529
  %vm533 = vc.u32 %v527, %v529
  %v534 = vadd.s32 %v530, 1
  %v535 = vsel %vm533, %v534, %v530
  %v536 = vadd.s32 %v531, %v535
  %v537 = vadd.s32 %v536, 536870912
  %v538 = vshrl.u32 %v537, 30
  %v539 = vshll.u32 %v538, 30
  %v540 = vsub.s32 %v536, %v539
  %vm541 = vcmp.lt.s32.totalorder %v540, 0
  %v542 = vsub.s32 0, %v540
  %v543 = vsel %vm541, %v542, %v540
  %v544 = vclz %v543
  %v545 = vsub.s32 %v544, 2
  %vm546 = vcmp.gt.s32.totalorder 0, %v545
  %v547 = vsel %vm546, 0, %v545
  %v548 = vsub.s32 32, %v547
  %v549 = vshll.u32 %v540, %v547
  %v550 = vshrl.u32 %v532, %v548
  %v551 = vor.u32 %v549, %v550
  %v552 = vsub.s32 4294967266, %v547
  %v553 = vadd.s32 %v552, 127
  %v554 = vshll.u32 %v553, 23
  %v555 = vor.u32 4788187, %v554
  %v556 = vand.u32 2147483647, %v555
  %v558 = vcvt.s32.f32 %v551
  %v559 = vmul.f32 %v558, %v556
  %v560 = vxor.u32 %v559, 2147483648
  %v561 = vsel %vm478, %v560, %v559
  %v562 = vsub.s32 4, %v538
  %v563 = vsel %vm478, %v562, %v538
  %v564 = vsel %vm477, %v370, %v561
  %v565 = vsel %vm477, 0, %v563
  %v566 = vcosq.f32.pop %v564
  %v567 = vsinq.f32.pop %v564
  %vm568 = vweird.f32 %v370
  %v569 = vand.u32 %v565, 3
  %vm570 = vcmp.lt.s32.totalorder %v569, 2
  %vm571 = vcmp.eq.s32.totalorder %v569, 0
  %v572 = vxor.u32 %v567, 2147483648
  %v573 = vsel %vm571, %v566, %v572
  %vm574 = vcmp.eq.s32.totalorder %v569, 2
  %v575 = vxor.u32 %v566, 2147483648
  %v576 = vsel %vm574, %v575, %v567
  %v577 = vsel %vm570, %v573, %v576
  %v578 = vsel %vm568, nan, %v577
  %v579 = vand.u32 2147483647, %v371
  %vm580 = vcmp.le.f32.partialorder %v579, 0.7853982
  %vm581 = vcmp.lt.s32.totalorder %v371, 0
  %v582 = vand.u32 %v371, 2139095040
  %v583 = vshrl.u32 %v582, 23
  %v584 = vsub.s32 %v583, 127
  %v585 = vand.u32 2147483647, %v371
  %v586 = vand.u32 %v585, 8388607
  %v587 = vor.u32 %v586, 8388608
  %v588 = vsub.s32 0, %v587
  %v589 = vadd.s32 %v584, 1
  %vm590 = vcmp.gt.s32.totalorder %v589, 0
  %v591 = vsel %vm590, %v589, 0
  %v592 = vshrl.u32 %v591, 5
  %v593 = vand.u32 %v591, 31
  %v594 = vsub.s32 32, %v593
  %v595 = vshrl.u32 683565275, %v594
  %v596 = vshll.u32 683565275, %v593
  %v597 = vshrl.u32 2475754826, %v594
  %v598 = vor.u32 %v596, %v597
  %v599 = vshll.u32 2475754826, %v593
  %v600 = vshrl.u32 2131351028, %v594
  %v601 = vor.u32 %v599, %v600
  %v602 = vshll.u32 2131351028, %v593
  %v603 = vshrl.u32 2102212464, %v594
  %v604 = vor.u32 %v602, %v603
  %v605 = vshll.u32 2102212464, %v593
  %v606 = vshrl.u32 920167782, %v594
  %v607 = vor.u32 %v605, %v606
  %v608 = vshll.u32 920167782, %v593
  %v609 = vshrl.u32 1326507024, %v594
  %v610 = vor.u32 %v608, %v609
  %vm611 = vcmp.lt.s32.totalorder %v592, 1
  %vm612 = vcmp.lt.s32.totalorder %v592, 2
  %vm613 = vcmp.lt.s32.totalorder %v592, 3
  %vm614 = vcmp.lt.s32.totalorder %v592, 4
  %v615 = vsel %vm611, %v595, %v598
  %v616 = vsel %vm614, %v604, 2102212464
  %v617 = vsel %vm613, %v601, %v616
  %v618 = vsel %vm612, %v615, %v617
  %v619 = vsel %vm611, %v598, %v601
  %v620 = vsel %vm614, %v607, 920167782
  %v621 = vsel %vm613, %v604, %v620
  %v622 = vsel %vm612, %v619, %v621
  %v623 = vsel %vm611, %v601, %v604
  %v624 = vsel %vm614, %v610, 1326507024
  %v625 = vsel %vm613, %v607, %v624
  %v626 = vsel %vm612, %v623, %v625
  %v627 = vshll.u32 %v587, 8
  %v628 = vmul.u32.u64.compose %v627, %v626
  %v629 = vextract.low.u32 %v628
  %v630 = vextract.high.u32 %v628
  %v631 = vmul.u32.u64.compose %v627, %v622
  %v632 = vextract.low.u32 %v631
  %v633 = vextract.high.u32 %v631
  %v634 = vmul.u32 %v627, %v618
  %v635 = vadd.s32 %v630, %v632
  %vm636 = vc.u32 %v630, %v632
  %v637 = vadd.s32 %v633, 1
  %v638 = vsel %vm636, %v637, %v633
  %v639 = vadd.s32 %v634, %v638
  %v640 = vadd.s32 %v639, 536870912
  %v641 = vshrl.u32 %v640, 30
  %v642 = vshll.u32 %v641, 30
  %v643 = vsub.s32 %v639, %v642
  %vm644 = vcmp.lt.s32.totalorder %v643, 0
  %v645 = vsub.s32 0, %v643
  %v646 = vsel %vm644, %v645, %v643
  %v647 = vclz %v646
  %v648 = vsub.s32 %v647, 2
  %vm649 = vcmp.gt.s32.totalorder 0, %v648
  %v650 = vsel %vm649, 0, %v648
  %v651 = vsub.s32 32, %v650
  %v652 = vshll.u32 %v643, %v650
  %v653 = vshrl.u32 %v635, %v651
  %v654 = vor.u32 %v652, %v653
  %v655 = vsub.s32 4294967266, %v650
  %v656 = vadd.s32 %v655, 127
  %v657 = vshll.u32 %v656, 23
  %v658 = vor.u32 4788187, %v657
  %v659 = vand.u32 2147483647, %v658
  %v661 = vcvt.s32.f32 %v654
  %v662 = vmul.f32 %v661, %v659
  %v663 = vxor.u32 %v662, 2147483648
  %v664 = vsel %vm581, %v663, %v662
  %v665 = vsub.s32 4, %v641
  %v666 = vsel %vm581, %v665, %v641
  %v667 = vsel %vm580, %v371, %v664
  %v668 = vsel %vm580, 0, %v666
  %v669 = vcosq.f32.pop %v667
  %v670 = vsinq.f32.pop %v667
  %vm671 = vweird.f32 %v371
  %v672 = vand.u32 %v668, 3
  %vm673 = vcmp.lt.s32.totalorder %v672, 2
  %vm674 = vcmp.eq.s32.totalorder %v672, 0
  %v675 = vxor.u32 %v670, 2147483648
  %v676 = vsel %vm674, %v669, %v675
  %vm677 = vcmp.eq.s32.totalorder %v672, 2
  %v678 = vxor.u32 %v669, 2147483648
  %v679 = vsel %vm677, %v678, %v670
  %v680 = vsel %vm673, %v676, %v679
  %v681 = vsel %vm671, nan, %v680
  %v682 = vand.u32 2147483647, %v372
  %vm683 = vcmp.le.f32.partialorder %v682, 0.7853982
  %vm684 = vcmp.lt.s32.totalorder %v372, 0
  %v685 = vand.u32 %v372, 2139095040
  %v686 = vshrl.u32 %v685, 23
  %v687 = vsub.s32 %v686, 127
  %v688 = vand.u32 2147483647, %v372
  %v689 = vand.u32 %v688, 8388607
  %v690 = vor.u32 %v689, 8388608
  %v691 = vsub.s32 0, %v690
  %v692 = vadd.s32 %v687, 1
  %vm693 = vcmp.gt.s32.totalorder %v692, 0
  %v694 = vsel %vm693, %v692, 0
  %v695 = vshrl.u32 %v694, 5
  %v696 = vand.u32 %v694, 31
  %v697 = vsub.s32 32, %v696
  %v698 = vshrl.u32 683565275, %v697
  %v699 = vshll.u32 683565275, %v696
  %v700 = vshrl.u32 2475754826, %v697
  %v701 = vor.u32 %v699, %v700
  %v702 = vshll.u32 2475754826, %v696
  %v703 = vshrl.u32 2131351028, %v697
  %v704 = vor.u32 %v702, %v703
  %v705 = vshll.u32 2131351028, %v696
  %v706 = vshrl.u32 2102212464, %v697
  %v707 = vor.u32 %v705, %v706
  %v708 = vshll.u32 2102212464, %v696
  %v709 = vshrl.u32 920167782, %v697
  %v710 = vor.u32 %v708, %v709
  %v711 = vshll.u32 920167782, %v696
  %v712 = vshrl.u32 1326507024, %v697
  %v713 = vor.u32 %v711, %v712
  %vm714 = vcmp.lt.s32.totalorder %v695, 1
  %vm715 = vcmp.lt.s32.totalorder %v695, 2
  %vm716 = vcmp.lt.s32.totalorder %v695, 3
  %vm717 = vcmp.lt.s32.totalorder %v695, 4
  %v718 = vsel %vm714, %v698, %v701
  %v719 = vsel %vm717, %v707, 2102212464
  %v720 = vsel %vm716, %v704, %v719
  %v721 = vsel %vm715, %v718, %v720
  %v722 = vsel %vm714, %v701, %v704
  %v723 = vsel %vm717, %v710, 920167782
  %v724 = vsel %vm716, %v707, %v723
  %v725 = vsel %vm715, %v722, %v724
  %v726 = vsel %vm714, %v704, %v707
  %v727 = vsel %vm717, %v713, 1326507024
  %v728 = vsel %vm716, %v710, %v727
  %v729 = vsel %vm715, %v726, %v728
  %v730 = vshll.u32 %v690, 8
  %v731 = vmul.u32.u64.compose %v730, %v729
  %v732 = vextract.low.u32 %v731
  %v733 = vextract.high.u32 %v731
  %v734 = vmul.u32.u64.compose %v730, %v725
  %v735 = vextract.low.u32 %v734
  %v736 = vextract.high.u32 %v734
  %v737 = vmul.u32 %v730, %v721
  %v738 = vadd.s32 %v733, %v735
  %vm739 = vc.u32 %v733, %v735
  %v740 = vadd.s32 %v736, 1
  %v741 = vsel %vm739, %v740, %v736
  %v742 = vadd.s32 %v737, %v741
  %v743 = vadd.s32 %v742, 536870912
  %v744 = vshrl.u32 %v743, 30
  %v745 = vshll.u32 %v744, 30
  %v746 = vsub.s32 %v742, %v745
  %vm747 = vcmp.lt.s32.totalorder %v746, 0
  %v748 = vsub.s32 0, %v746
  %v749 = vsel %vm747, %v748, %v746
  %v750 = vclz %v749
  %v751 = vsub.s32 %v750, 2
  %vm752 = vcmp.gt.s32.totalorder 0, %v751
  %v753 = vsel %vm752, 0, %v751
  %v754 = vsub.s32 32, %v753
  %v755 = vshll.u32 %v746, %v753
  %v756 = vshrl.u32 %v738, %v754
  %v757 = vor.u32 %v755, %v756
  %v758 = vsub.s32 4294967266, %v753
  %v759 = vadd.s32 %v758, 127
  %v760 = vshll.u32 %v759, 23
  %v761 = vor.u32 4788187, %v760
  %v762 = vand.u32 2147483647, %v761
  %v764 = vcvt.s32.f32 %v757
  %v765 = vmul.f32 %v764, %v762
  %v766 = vxor.u32 %v765, 2147483648
  %v767 = vsel %vm684, %v766, %v765
  %v768 = vsub.s32 4, %v744
  %v769 = vsel %vm684, %v768, %v744
  %v770 = vsel %vm683, %v372, %v767
  %v771 = vsel %vm683, 0, %v769
  %v772 = vcosq.f32.pop %v770
  %v773 = vsinq.f32.pop %v770
  %vm774 = vweird.f32 %v372
  %v775 = vand.u32 %v771, 3
  %vm776 = vcmp.lt.s32.totalorder %v775, 2
  %vm777 = vcmp.eq.s32.totalorder %v775, 0
  %v778 = vxor.u32 %v773, 2147483648
  %v779 = vsel %vm777, %v772, %v778
  %vm780 = vcmp.eq.s32.totalorder %v775, 2
  %v781 = vxor.u32 %v772, 2147483648
  %v782 = vsel %vm780, %v781, %v773
  %v783 = vsel %vm776, %v779, %v782
  %v784 = vsel %vm774, nan, %v783
  %v785 = vand.u32 2147483647, %v369
  %vm786 = vcmp.le.f32.partialorder %v785, 0.7853982
  %vm787 = vcmp.lt.s32.totalorder %v369, 0
  %v788 = vand.u32 %v369, 2139095040
  %v789 = vshrl.u32 %v788, 23
  %v790 = vsub.s32 %v789, 127
  %v791 = vand.u32 2147483647, %v369
  %v792 = vand.u32 %v791, 8388607
  %v793 = vor.u32 %v792, 8388608
  %v794 = vsub.s32 0, %v793
  %v795 = vadd.s32 %v790, 1
  %vm796 = vcmp.gt.s32.totalorder %v795, 0
  %v797 = vsel %vm796, %v795, 0
  %v798 = vshrl.u32 %v797, 5
  %v799 = vand.u32 %v797, 31
  %v800 = vsub.s32 32, %v799
  %v801 = vshrl.u32 683565275, %v800
  %v802 = vshll.u32 683565275, %v799
  %v803 = vshrl.u32 2475754826, %v800
  %v804 = vor.u32 %v802, %v803
  %v805 = vshll.u32 2475754826, %v799
  %v806 = vshrl.u32 2131351028, %v800
  %v807 = vor.u32 %v805, %v806
  %v808 = vshll.u32 2131351028, %v799
  %v809 = vshrl.u32 2102212464, %v800
  %v810 = vor.u32 %v808, %v809
  %v811 = vshll.u32 2102212464, %v799
  %v812 = vshrl.u32 920167782, %v800
  %v813 = vor.u32 %v811, %v812
  %v814 = vshll.u32 920167782, %v799
  %v815 = vshrl.u32 1326507024, %v800
  %v816 = vor.u32 %v814, %v815
  %vm817 = vcmp.lt.s32.totalorder %v798, 1
  %vm818 = vcmp.lt.s32.totalorder %v798, 2
  %vm819 = vcmp.lt.s32.totalorder %v798, 3
  %vm820 = vcmp.lt.s32.totalorder %v798, 4
  %v821 = vsel %vm817, %v801, %v804
  %v822 = vsel %vm820, %v810, 2102212464
  %v823 = vsel %vm819, %v807, %v822
  %v824 = vsel %vm818, %v821, %v823
  %v825 = vsel %vm817, %v804, %v807
  %v826 = vsel %vm820, %v813, 920167782
  %v827 = vsel %vm819, %v810, %v826
  %v828 = vsel %vm818, %v825, %v827
  %v829 = vsel %vm817, %v807, %v810
  %v830 = vsel %vm820, %v816, 1326507024
  %v831 = vsel %vm819, %v813, %v830
  %v832 = vsel %vm818, %v829, %v831
  %v833 = vshll.u32 %v793, 8
  %v834 = vmul.u32.u64.compose %v833, %v832
  %v835 = vextract.low.u32 %v834
  %v836 = vextract.high.u32 %v834
  %v837 = vmul.u32.u64.compose %v833, %v828
  %v838 = vextract.low.u32 %v837
  %v839 = vextract.high.u32 %v837
  %v840 = vmul.u32 %v833, %v824
  %v841 = vadd.s32 %v836, %v838
  %vm842 = vc.u32 %v836, %v838
  %v843 = vadd.s32 %v839, 1
  %v844 = vsel %vm842, %v843, %v839
  %v845 = vadd.s32 %v840, %v844
  %v846 = vadd.s32 %v845, 536870912
  %v847 = vshrl.u32 %v846, 30
  %v848 = vshll.u32 %v847, 30
  %v849 = vsub.s32 %v845, %v848
  %vm850 = vcmp.lt.s32.totalorder %v849, 0
  %v851 = vsub.s32 0, %v849
  %v852 = vsel %vm850, %v851, %v849
  %v853 = vclz %v852
  %v854 = vsub.s32 %v853, 2
  %vm855 = vcmp.gt.s32.totalorder 0, %v854
  %v856 = vsel %vm855, 0, %v854
  %v857 = vsub.s32 32, %v856
  %v858 = vshll.u32 %v849, %v856
  %v859 = vshrl.u32 %v841, %v857
  %v860 = vor.u32 %v858, %v859
  %v861 = vsub.s32 4294967266, %v856
  %v862 = vadd.s32 %v861, 127
  %v863 = vshll.u32 %v862, 23
  %v864 = vor.u32 4788187, %v863
  %v865 = vand.u32 2147483647, %v864
  %v867 = vcvt.s32.f32 %v860
  %v868 = vmul.f32 %v867, %v865
  %v869 = vxor.u32 %v868, 2147483648
  %v870 = vsel %vm787, %v869, %v868
  %v871 = vsub.s32 4, %v847
  %v872 = vsel %vm787, %v871, %v847
  %v873 = vsel %vm786, %v369, %v870
  %v874 = vsel %vm786, 0, %v872
  %v875 = vcosq.f32.pop %v873
  %v876 = vsinq.f32.pop %v873
  %vm877 = vweird.f32 %v369
  %v878 = vadd.s32 %v874, 3
  %v879 = vand.u32 %v878, 3
  %vm880 = vcmp.lt.s32.totalorder %v879, 2
  %vm881 = vcmp.eq.s32.totalorder %v879, 0
  %v882 = vxor.u32 %v876, 2147483648
  %v883 = vsel %vm881, %v875, %v882
  %vm884 = vcmp.eq.s32.totalorder %v879, 2
  %v885 = vxor.u32 %v875, 2147483648
  %v886 = vsel %vm884, %v885, %v876
  %v887 = vsel %vm880, %v883, %v886
  %v888 = vsel %vm877, nan, %v887
  %v889 = vand.u32 2147483647, %v370
  %vm890 = vcmp.le.f32.partialorder %v889, 0.7853982
  %vm891 = vcmp.lt.s32.totalorder %v370, 0
  %v892 = vand.u32 %v370, 2139095040
  %v893 = vshrl.u32 %v892, 23
  %v894 = vsub.s32 %v893, 127
  %v895 = vand.u32 2147483647, %v370
  %v896 = vand.u32 %v895, 8388607
  %v897 = vor.u32 %v896, 8388608
  %v898 = vsub.s32 0, %v897
  %v899 = vadd.s32 %v894, 1
  %vm900 = vcmp.gt.s32.totalorder %v899, 0
  %v901 = vsel %vm900, %v899, 0
  %v902 = vshrl.u32 %v901, 5
  %v903 = vand.u32 %v901, 31
  %v904 = vsub.s32 32, %v903
  %v905 = vshrl.u32 683565275, %v904
  %v906 = vshll.u32 683565275, %v903
  %v907 = vshrl.u32 2475754826, %v904
  %v908 = vor.u32 %v906, %v907
  %v909 = vshll.u32 2475754826, %v903
  %v910 = vshrl.u32 2131351028, %v904
  %v911 = vor.u32 %v909, %v910
  %v912 = vshll.u32 2131351028, %v903
  %v913 = vshrl.u32 2102212464, %v904
  %v914 = vor.u32 %v912, %v913
  %v915 = vshll.u32 2102212464, %v903
  %v916 = vshrl.u32 920167782, %v904
  %v917 = vor.u32 %v915, %v916
  %v918 = vshll.u32 920167782, %v903
  %v919 = vshrl.u32 1326507024, %v904
  %v920 = vor.u32 %v918, %v919
  %vm921 = vcmp.lt.s32.totalorder %v902, 1
  %vm922 = vcmp.lt.s32.totalorder %v902, 2
  %vm923 = vcmp.lt.s32.totalorder %v902, 3
  %vm924 = vcmp.lt.s32.totalorder %v902, 4
  %v925 = vsel %vm921, %v905, %v908
  %v926 = vsel %vm924, %v914, 2102212464
  %v927 = vsel %vm923, %v911, %v926
  %v928 = vsel %vm922, %v925, %v927
  %v929 = vsel %vm921, %v908, %v911
  %v930 = vsel %vm924, %v917, 920167782
  %v931 = vsel %vm923, %v914, %v930
  %v932 = vsel %vm922, %v929, %v931
  %v933 = vsel %vm921, %v911, %v914
  %v934 = vsel %vm924, %v920, 1326507024
  %v935 = vsel %vm923, %v917, %v934
  %v936 = vsel %vm922, %v933, %v935
  %v937 = vshll.u32 %v897, 8
  %v938 = vmul.u32.u64.compose %v937, %v936
  %v939 = vextract.low.u32 %v938
  %v940 = vextract.high.u32 %v938
  %v941 = vmul.u32.u64.compose %v937, %v932
  %v942 = vextract.low.u32 %v941
  %v943 = vextract.high.u32 %v941
  %v944 = vmul.u32 %v937, %v928
  %v945 = vadd.s32 %v940, %v942
  %vm946 = vc.u32 %v940, %v942
  %v947 = vadd.s32 %v943, 1
  %v948 = vsel %vm946, %v947, %v943
  %v949 = vadd.s32 %v944, %v948
  %v950 = vadd.s32 %v949, 536870912
  %v951 = vshrl.u32 %v950, 30
  %v952 = vshll.u32 %v951, 30
  %v953 = vsub.s32 %v949, %v952
  %vm954 = vcmp.lt.s32.totalorder %v953, 0
  %v955 = vsub.s32 0, %v953
  %v956 = vsel %vm954, %v955, %v953
  %v957 = vclz %v956
  %v958 = vsub.s32 %v957, 2
  %vm959 = vcmp.gt.s32.totalorder 0, %v958
  %v960 = vsel %vm959, 0, %v958
  %v961 = vsub.s32 32, %v960
  %v962 = vshll.u32 %v953, %v960
  %v963 = vshrl.u32 %v945, %v961
  %v964 = vor.u32 %v962, %v963
  %v965 = vsub.s32 4294967266, %v960
  %v966 = vadd.s32 %v965, 127
  %v967 = vshll.u32 %v966, 23
  %v968 = vor.u32 4788187, %v967
  %v969 = vand.u32 2147483647, %v968
  %v971 = vcvt.s32.f32 %v964
  %v972 = vmul.f32 %v971, %v969
  %v973 = vxor.u32 %v972, 2147483648
  %v974 = vsel %vm891, %v973, %v972
  %v975 = vsub.s32 4, %v951
  %v976 = vsel %vm891, %v975, %v951
  %v977 = vsel %vm890, %v370, %v974
  %v978 = vsel %vm890, 0, %v976
  %v979 = vcosq.f32.pop %v977
  %v980 = vsinq.f32.pop %v977
  %vm981 = vweird.f32 %v370
  %v982 = vadd.s32 %v978, 3
  %v983 = vand.u32 %v982, 3
  %vm984 = vcmp.lt.s32.totalorder %v983, 2
  %vm985 = vcmp.eq.s32.totalorder %v983, 0
  %v986 = vxor.u32 %v980, 2147483648
  %v987 = vsel %vm985, %v979, %v986
  %vm988 = vcmp.eq.s32.totalorder %v983, 2
  %v989 = vxor.u32 %v979, 2147483648
  %v990 = vsel %vm988, %v989, %v980
  %v991 = vsel %vm984, %v987, %v990
  %v992 = vsel %vm981, nan, %v991
  %v993 = vand.u32 2147483647, %v371
  %vm994 = vcmp.le.f32.partialorder %v993, 0.7853982
  %vm995 = vcmp.lt.s32.totalorder %v371, 0
  %v996 = vand.u32 %v371, 2139095040
  %v997 = vshrl.u32 %v996, 23
  %v998 = vsub.s32 %v997, 127
  %v999 = vand.u32 2147483647, %v371
  %v1000 = vand.u32 %v999, 8388607
  %v1001 = vor.u32 %v1000, 8388608
  %v1002 = vsub.s32 0, %v1001
  %v1003 = vadd.s32 %v998, 1
  %vm1004 = vcmp.gt.s32.totalorder %v1003, 0
  %v1005 = vsel %vm1004, %v1003, 0
  %v1006 = vshrl.u32 %v1005, 5
  %v1007 = vand.u32 %v1005, 31
  %v1008 = vsub.s32 32, %v1007
  %v1009 = vshrl.u32 683565275, %v1008
  %v1010 = vshll.u32 683565275, %v1007
  %v1011 = vshrl.u32 2475754826, %v1008
  %v1012 = vor.u32 %v1010, %v1011
  %v1013 = vshll.u32 2475754826, %v1007
  %v1014 = vshrl.u32 2131351028, %v1008
  %v1015 = vor.u32 %v1013, %v1014
  %v1016 = vshll.u32 2131351028, %v1007
  %v1017 = vshrl.u32 2102212464, %v1008
  %v1018 = vor.u32 %v1016, %v1017
  %v1019 = vshll.u32 2102212464, %v1007
  %v1020 = vshrl.u32 920167782, %v1008
  %v1021 = vor.u32 %v1019, %v1020
  %v1022 = vshll.u32 920167782, %v1007
  %v1023 = vshrl.u32 1326507024, %v1008
  %v1024 = vor.u32 %v1022, %v1023
  %vm1025 = vcmp.lt.s32.totalorder %v1006, 1
  %vm1026 = vcmp.lt.s32.totalorder %v1006, 2
  %vm1027 = vcmp.lt.s32.totalorder %v1006, 3
  %vm1028 = vcmp.lt.s32.totalorder %v1006, 4
  %v1029 = vsel %vm1025, %v1009, %v1012
  %v1030 = vsel %vm1028, %v1018, 2102212464
  %v1031 = vsel %vm1027, %v1015, %v1030
  %v1032 = vsel %vm1026, %v1029, %v1031
  %v1033 = vsel %vm1025, %v1012, %v1015
  %v1034 = vsel %vm1028, %v1021, 920167782
  %v1035 = vsel %vm1027, %v1018, %v1034
  %v1036 = vsel %vm1026, %v1033, %v1035
  %v1037 = vsel %vm1025, %v1015, %v1018
  %v1038 = vsel %vm1028, %v1024, 1326507024
  %v1039 = vsel %vm1027, %v1021, %v1038
  %v1040 = vsel %vm1026, %v1037, %v1039
  %v1041 = vshll.u32 %v1001, 8
  %v1042 = vmul.u32.u64.compose %v1041, %v1040
  %v1043 = vextract.low.u32 %v1042
  %v1044 = vextract.high.u32 %v1042
  %v1045 = vmul.u32.u64.compose %v1041, %v1036
  %v1046 = vextract.low.u32 %v1045
  %v1047 = vextract.high.u32 %v1045
  %v1048 = vmul.u32 %v1041, %v1032
  %v1049 = vadd.s32 %v1044, %v1046
  %vm1050 = vc.u32 %v1044, %v1046
  %v1051 = vadd.s32 %v1047, 1
  %v1052 = vsel %vm1050, %v1051, %v1047
  %v1053 = vadd.s32 %v1048, %v1052
  %v1054 = vadd.s32 %v1053, 536870912
  %v1055 = vshrl.u32 %v1054, 30
  %v1056 = vshll.u32 %v1055, 30
  %v1057 = vsub.s32 %v1053, %v1056
  %vm1058 = vcmp.lt.s32.totalorder %v1057, 0
  %v1059 = vsub.s32 0, %v1057
  %v1060 = vsel %vm1058, %v1059, %v1057
  %v1061 = vclz %v1060
  %v1062 = vsub.s32 %v1061, 2
  %vm1063 = vcmp.gt.s32.totalorder 0, %v1062
  %v1064 = vsel %vm1063, 0, %v1062
  %v1065 = vsub.s32 32, %v1064
  %v1066 = vshll.u32 %v1057, %v1064
  %v1067 = vshrl.u32 %v1049, %v1065
  %v1068 = vor.u32 %v1066, %v1067
  %v1069 = vsub.s32 4294967266, %v1064
  %v1070 = vadd.s32 %v1069, 127
  %v1071 = vshll.u32 %v1070, 23
  %v1072 = vor.u32 4788187, %v1071
  %v1073 = vand.u32 2147483647, %v1072
  %v1075 = vcvt.s32.f32 %v1068
  %v1076 = vmul.f32 %v1075, %v1073
  %v1077 = vxor.u32 %v1076, 2147483648
  %v1078 = vsel %vm995, %v1077, %v1076
  %v1079 = vsub.s32 4, %v1055
  %v1080 = vsel %vm995, %v1079, %v1055
  %v1081 = vsel %vm994, %v371, %v1078
  %v1082 = vsel %vm994, 0, %v1080
  %v1083 = vcosq.f32.pop %v1081
  %v1084 = vsinq.f32.pop %v1081
  %vm1085 = vweird.f32 %v371
  %v1086 = vadd.s32 %v1082, 3
  %v1087 = vand.u32 %v1086, 3
  %vm1088 = vcmp.lt.s32.totalorder %v1087, 2
  %vm1089 = vcmp.eq.s32.totalorder %v1087, 0
  %v1090 = vxor.u32 %v1084, 2147483648
  %v1091 = vsel %vm1089, %v1083, %v1090
  %vm1092 = vcmp.eq.s32.totalorder %v1087, 2
  %v1093 = vxor.u32 %v1083, 2147483648
  %v1094 = vsel %vm1092, %v1093, %v1084
  %v1095 = vsel %vm1088, %v1091, %v1094
  %v1096 = vsel %vm1085, nan, %v1095
  %v1097 = vand.u32 2147483647, %v372
  %vm1098 = vcmp.le.f32.partialorder %v1097, 0.7853982
  %vm1099 = vcmp.lt.s32.totalorder %v372, 0
  %v1100 = vand.u32 %v372, 2139095040
  %v1101 = vshrl.u32 %v1100, 23
  %v1102 = vsub.s32 %v1101, 127
  %v1103 = vand.u32 2147483647, %v372
  %v1104 = vand.u32 %v1103, 8388607
  %v1105 = vor.u32 %v1104, 8388608
  %v1106 = vsub.s32 0, %v1105
  %v1107 = vadd.s32 %v1102, 1
  %vm1108 = vcmp.gt.s32.totalorder %v1107, 0
  %v1109 = vsel %vm1108, %v1107, 0
  %v1110 = vshrl.u32 %v1109, 5
  %v1111 = vand.u32 %v1109, 31
  %v1112 = vsub.s32 32, %v1111
  %v1113 = vshrl.u32 683565275, %v1112
  %v1114 = vshll.u32 683565275, %v1111
  %v1115 = vshrl.u32 2475754826, %v1112
  %v1116 = vor.u32 %v1114, %v1115
  %v1117 = vshll.u32 2475754826, %v1111
  %v1118 = vshrl.u32 2131351028, %v1112
  %v1119 = vor.u32 %v1117, %v1118
  %v1120 = vshll.u32 2131351028, %v1111
  %v1121 = vshrl.u32 2102212464, %v1112
  %v1122 = vor.u32 %v1120, %v1121
  %v1123 = vshll.u32 2102212464, %v1111
  %v1124 = vshrl.u32 920167782, %v1112
  %v1125 = vor.u32 %v1123, %v1124
  %v1126 = vshll.u32 920167782, %v1111
  %v1127 = vshrl.u32 1326507024, %v1112
  %v1128 = vor.u32 %v1126, %v1127
  %vm1129 = vcmp.lt.s32.totalorder %v1110, 1
  %vm1130 = vcmp.lt.s32.totalorder %v1110, 2
  %vm1131 = vcmp.lt.s32.totalorder %v1110, 3
  %vm1132 = vcmp.lt.s32.totalorder %v1110, 4
  %v1133 = vsel %vm1129, %v1113, %v1116
  %v1134 = vsel %vm1132, %v1122, 2102212464
  %v1135 = vsel %vm1131, %v1119, %v1134
  %v1136 = vsel %vm1130, %v1133, %v1135
  %v1137 = vsel %vm1129, %v1116, %v1119
  %v1138 = vsel %vm1132, %v1125, 920167782
  %v1139 = vsel %vm1131, %v1122, %v1138
  %v1140 = vsel %vm1130, %v1137, %v1139
  %v1141 = vsel %vm1129, %v1119, %v1122
  %v1142 = vsel %vm1132, %v1128, 1326507024
  %v1143 = vsel %vm1131, %v1125, %v1142
  %v1144 = vsel %vm1130, %v1141, %v1143
  %v1145 = vshll.u32 %v1105, 8
  %v1146 = vmul.u32.u64.compose %v1145, %v1144
  %v1147 = vextract.low.u32 %v1146
  %v1148 = vextract.high.u32 %v1146
  %v1149 = vmul.u32.u64.compose %v1145, %v1140
  %v1150 = vextract.low.u32 %v1149
  %v1151 = vextract.high.u32 %v1149
  %v1152 = vmul.u32 %v1145, %v1136
  %v1153 = vadd.s32 %v1148, %v1150
  %vm1154 = vc.u32 %v1148, %v1150
  %v1155 = vadd.s32 %v1151, 1
  %v1156 = vsel %vm1154, %v1155, %v1151
  %v1157 = vadd.s32 %v1152, %v1156
  %v1158 = vadd.s32 %v1157, 536870912
  %v1159 = vshrl.u32 %v1158, 30
  %v1160 = vshll.u32 %v1159, 30
  %v1161 = vsub.s32 %v1157, %v1160
  %vm1162 = vcmp.lt.s32.totalorder %v1161, 0
  %v1163 = vsub.s32 0, %v1161
  %v1164 = vsel %vm1162, %v1163, %v1161
  %v1165 = vclz %v1164
  %v1166 = vsub.s32 %v1165, 2
  %vm1167 = vcmp.gt.s32.totalorder 0, %v1166
  %v1168 = vsel %vm1167, 0, %v1166
  %v1169 = vsub.s32 32, %v1168
  %v1170 = vshll.u32 %v1161, %v1168
  %v1171 = vshrl.u32 %v1153, %v1169
  %v1172 = vor.u32 %v1170, %v1171
  %v1173 = vsub.s32 4294967266, %v1168
  %v1174 = vadd.s32 %v1173, 127
  %v1175 = vshll.u32 %v1174, 23
  %v1176 = vor.u32 4788187, %v1175
  %v1177 = vand.u32 2147483647, %v1176
  %v1179 = vcvt.s32.f32 %v1172
  %v1180 = vmul.f32 %v1179, %v1177
  %v1181 = vxor.u32 %v1180, 2147483648
  %v1182 = vsel %vm1099, %v1181, %v1180
  %v1183 = vsub.s32 4, %v1159
  %v1184 = vsel %vm1099, %v1183, %v1159
  %v1185 = vsel %vm1098, %v372, %v1182
  %v1186 = vsel %vm1098, 0, %v1184
  %v1187 = vcosq.f32.pop %v1185
  %v1188 = vsinq.f32.pop %v1185
  %vm1189 = vweird.f32 %v372
  %v1190 = vadd.s32 %v1186, 3
  %v1191 = vand.u32 %v1190, 3
  %vm1192 = vcmp.lt.s32.totalorder %v1191, 2
  %vm1193 = vcmp.eq.s32.totalorder %v1191, 0
  %v1194 = vxor.u32 %v1188, 2147483648
  %v1195 = vsel %vm1193, %v1187, %v1194
  %vm1196 = vcmp.eq.s32.totalorder %v1191, 2
  %v1197 = vxor.u32 %v1187, 2147483648
  %v1198 = vsel %vm1196, %v1197, %v1188
  %v1199 = vsel %vm1192, %v1195, %v1198
  %v1200 = vsel %vm1189, nan, %v1199
  %vm1201 = vcmask 130048
  %v1202 = vsel %vm1201, %v16, 0
  %v1204 = vsel %vm1201, %v17, 0
  %1206 = vmatprep.subr.mxu0 %v578
  %1207 = vmatpush1.msra.mxu0 %v475
  %1208 = vmatprep.subr.mxu0 %v784
  %1209 = vmatpush1.msra.mxu0 %v681
  %1210 = vmatprep.subr.mxu0 0.0
  %1211 = vmatpush1.msra.mxu0 0.0
  %1212 = vmatprep.subr.mxu0 0.0
  %1213 = vmatpush1.msra.mxu0 0.0
  %1214 = vmatprep.subr.mxu0 0.0
  %1215 = vmatpush1.msra.mxu0 0.0
  %1216 = vmatprep.subr.mxu0 0.0
  %1217 = vmatpush1.msra.mxu0 0.0
  %1218 = vmatprep.subr.mxu0 0.0
  %1219 = vmatpush1.msra.mxu0 0.0
  %1220 = vmatprep.subr.mxu0 0.0
  %1221 = vmatpush1.msra.mxu0 0.0
  %1222 = vmatprep.subr.mxu0 0.0
  %1223 = vmatpush1.msra.mxu0 0.0
  %1224 = vmatprep.subr.mxu0 0.0
  %1225 = vmatpush1.msra.mxu0 0.0
  %1226 = vmatprep.subr.mxu0 0.0
  %1227 = vmatpush1.msra.mxu0 0.0
  %1228 = vmatprep.subr.mxu0 0.0
  %1229 = vmatpush1.msra.mxu0 0.0
  %1230 = vmatprep.subr.mxu0 0.0
  %1231 = vmatpush1.msra.mxu0 0.0
  %1232 = vmatprep.subr.mxu0 0.0
  %1233 = vmatpush1.msra.mxu0 0.0
  %1234 = vmatprep.subr.mxu0 0.0
  %1235 = vmatpush1.msra.mxu0 0.0
  %1236 = vmatprep.subr.mxu0 0.0
  %1237 = vmatpush1.msra.mxu0 0.0
  %1238 = vmatprep.subr.mxu0 0.0
  %1239 = vmatpush1.msra.mxu0 0.0
  %1240 = vmatprep.subr.mxu0 0.0
  %1241 = vmatpush1.msra.mxu0 0.0
  %1242 = vmatprep.subr.mxu0 0.0
  %1243 = vmatpush1.msra.mxu0 0.0
  %1244 = vmatprep.subr.mxu0 0.0
  %1245 = vmatpush1.msra.mxu0 0.0
  %1246 = vmatprep.subr.mxu0 0.0
  %1247 = vmatpush1.msra.mxu0 0.0
  %1248 = vmatprep.subr.mxu0 0.0
  %1249 = vmatpush1.msra.mxu0 0.0
  %1250 = vmatprep.subr.mxu0 0.0
  %1251 = vmatpush1.msra.mxu0 0.0
  %1252 = vmatprep.subr.mxu0 0.0
  %1253 = vmatpush1.msra.mxu0 0.0
  %1254 = vmatprep.subr.mxu0 0.0
  %1255 = vmatpush1.msra.mxu0 0.0
  %1256 = vmatprep.subr.mxu0 0.0
  %1257 = vmatpush1.msra.mxu0 0.0
  %1258 = vmatprep.subr.mxu0 0.0
  %1259 = vmatpush1.msra.mxu0 0.0
  %1260 = vmatprep.subr.mxu0 0.0
  %1261 = vmatpush1.msra.mxu0 0.0
  %1262 = vmatprep.subr.mxu0 0.0
  %1263 = vmatpush1.msra.mxu0 0.0
  %1264 = vmatprep.subr.mxu0 0.0
  %1265 = vmatpush1.msra.mxu0 0.0
  %1266 = vmatprep.subr.mxu0 0.0
  %1267 = vmatpush1.msra.mxu0 0.0
  %1268 = vmatprep.subr.mxu0 0.0
  %1269 = vmatpush1.msra.mxu0 0.0
  %1270 = vmatprep.mubr.f32.mxu0 0.0
  %1271 = vmatmul.mubr.f32.gmra.mrb[0].mxu0 %v1202
  %v1272 = vpop.f32.mrb[0].mxu0
  %v1273 = vadd.f32 0.0, %v1272
  %v1274 = vpop.f32.mrb[0].mxu0
  %v1275 = vadd.f32 0.0, %v1274
  %1276 = vmatprep.mubr.f32.mxu0 0.0
  %1277 = vmatmul.mubr.f32.gmra.mrb[0].mxu0 %v1204
  %v1278 = vpop.f32.mrb[0].mxu0
  %v1279 = vadd.f32 0.0, %v1278
  %v1280 = vpop.f32.mrb[0].mxu0
  %v1281 = vadd.f32 0.0, %v1280
  %1282 = vdwg.mxu0
  %1283 = vmatprep.subr.mxu0 %v992
  %1284 = vmatpush1.msra.mxu0 %v888
  %1285 = vmatprep.subr.mxu0 %v1200
  %1286 = vmatpush1.msra.mxu0 %v1096
  %1287 = vmatprep.subr.mxu0 0.0
  %1288 = vmatpush1.msra.mxu0 0.0
  %1289 = vmatprep.subr.mxu0 0.0
  %1290 = vmatpush1.msra.mxu0 0.0
  %1291 = vmatprep.subr.mxu0 0.0
  %1292 = vmatpush1.msra.mxu0 0.0
  %1293 = vmatprep.subr.mxu0 0.0
  %1294 = vmatpush1.msra.mxu0 0.0
  %1295 = vmatprep.subr.mxu0 0.0
  %1296 = vmatpush1.msra.mxu0 0.0
  %1297 = vmatprep.subr.mxu0 0.0
  %1298 = vmatpush1.msra.mxu0 0.0
  %1299 = vmatprep.subr.mxu0 0.0
  %1300 = vmatpush1.msra.mxu0 0.0
  %1301 = vmatprep.subr.mxu0 0.0
  %1302 = vmatpush1.msra.mxu0 0.0
  %1303 = vmatprep.subr.mxu0 0.0
  %1304 = vmatpush1.msra.mxu0 0.0
  %1305 = vmatprep.subr.mxu0 0.0
  %1306 = vmatpush1.msra.mxu0 0.0
  %1307 = vmatprep.subr.mxu0 0.0
  %1308 = vmatpush1.msra.mxu0 0.0
  %1309 = vmatprep.subr.mxu0 0.0
  %1310 = vmatpush1.msra.mxu0 0.0
  %1311 = vmatprep.subr.mxu0 0.0
  %1312 = vmatpush1.msra.mxu0 0.0
  %1313 = vmatprep.subr.mxu0 0.0
  %1314 = vmatpush1.msra.mxu0 0.0
  %1315 = vmatprep.subr.mxu0 0.0
  %1316 = vmatpush1.msra.mxu0 0.0
  %1317 = vmatprep.subr.mxu0 0.0
  %1318 = vmatpush1.msra.mxu0 0.0
  %1319 = vmatprep.subr.mxu0 0.0
  %1320 = vmatpush1.msra.mxu0 0.0
  %1321 = vmatprep.subr.mxu0 0.0
  %1322 = vmatpush1.msra.mxu0 0.0
  %1323 = vmatprep.subr.mxu0 0.0
  %1324 = vmatpush1.msra.mxu0 0.0
  %1325 = vmatprep.subr.mxu0 0.0
  %1326 = vmatpush1.msra.mxu0 0.0
  %1327 = vmatprep.subr.mxu0 0.0
  %1328 = vmatpush1.msra.mxu0 0.0
  %1329 = vmatprep.subr.mxu0 0.0
  %1330 = vmatpush1.msra.mxu0 0.0
  %1331 = vmatprep.subr.mxu0 0.0
  %1332 = vmatpush1.msra.mxu0 0.0
  %1333 = vmatprep.subr.mxu0 0.0
  %1334 = vmatpush1.msra.mxu0 0.0
  %1335 = vmatprep.subr.mxu0 0.0
  %1336 = vmatpush1.msra.mxu0 0.0
  %1337 = vmatprep.subr.mxu0 0.0
  %1338 = vmatpush1.msra.mxu0 0.0
  %1339 = vmatprep.subr.mxu0 0.0
  %1340 = vmatpush1.msra.mxu0 0.0
  %1341 = vmatprep.subr.mxu0 0.0
  %1342 = vmatpush1.msra.mxu0 0.0
  %1343 = vmatprep.subr.mxu0 0.0
  %1344 = vmatpush1.msra.mxu0 0.0
  %1345 = vmatprep.subr.mxu0 0.0
  %1346 = vmatpush1.msra.mxu0 0.0
  %1347 = vmatprep.mubr.f32.mxu0 0.0
  %1348 = vmatmul.mubr.f32.gmra.mrb[0].mxu0 %v1202
  %v1349 = vpop.f32.mrb[0].mxu0
  %v1350 = vadd.f32 0.0, %v1349
  %v1351 = vpop.f32.mrb[0].mxu0
  %v1352 = vadd.f32 0.0, %v1351
  %1353 = vmatprep.mubr.f32.mxu0 0.0
  %1354 = vmatmul.mubr.f32.gmra.mrb[0].mxu0 %v1204
  %v1355 = vpop.f32.mrb[0].mxu0
  %v1356 = vadd.f32 0.0, %v1355
  %v1357 = vpop.f32.mrb[0].mxu0
  %v1358 = vadd.f32 0.0, %v1357
  %1359 = vdwg.mxu0
  %v1360 = vmul.f32 %v475, %v1273
  %v1361 = vmul.f32 %v578, %v1275
  %v1362 = vmul.f32 %v681, %v1279
  %v1363 = vmul.f32 %v784, %v1281
  %v1364 = vmul.f32 %v888, %v1350
  %v1365 = vmul.f32 %v992, %v1352
  %v1366 = vmul.f32 %v1096, %v1356
  %v1367 = vmul.f32 %v1200, %v1358
  %v1368 = vsub.f32 %v1360, %v1364
  %v1369 = vsub.f32 %v1361, %v1365
  %v1370 = vsub.f32 %v1362, %v1366
  %v1371 = vsub.f32 %v1363, %v1367
  %v1372 = vmul.f32 %v888, %v1273
  %v1373 = vmul.f32 %v992, %v1275
  %v1374 = vmul.f32 %v1096, %v1279
  %v1375 = vmul.f32 %v1200, %v1281
  %v1376 = vmul.f32 %v475, %v1350
  %v1377 = vmul.f32 %v578, %v1352
  %v1378 = vmul.f32 %v681, %v1356
  %v1379 = vmul.f32 %v784, %v1358
  %v1380 = vadd.f32 %v1372, %v1376
  %v1381 = vadd.f32 %v1373, %v1377
  %v1382 = vadd.f32 %v1374, %v1378
  %v1383 = vadd.f32 %v1375, %v1379
  %1384 = vrot.lane.b32.xlu0 %v16, 112
  %v1385 = vpop.permute.xlu0 %1384
  %1386 = vrot.lane.b32.xlu0 %v17, 112
  %v1387 = vpop.permute.xlu0 %1386
  %v1388 = vsel %vm1201, %v1385, 0
  %v1390 = vsel %vm1201, %v1387, 0
  %1392 = vmatprep.subr.mxu0 %v1369
  %1393 = vmatpush1.msra.mxu0 %v1368
  %1394 = vmatprep.subr.mxu0 %v1371
  %1395 = vmatpush1.msra.mxu0 %v1370
  %1396 = vmatprep.subr.mxu0 0.0
  %1397 = vmatpush1.msra.mxu0 0.0
  %1398 = vmatprep.subr.mxu0 0.0
  %1399 = vmatpush1.msra.mxu0 0.0
  %1400 = vmatprep.subr.mxu0 0.0
  %1401 = vmatpush1.msra.mxu0 0.0
  %1402 = vmatprep.subr.mxu0 0.0
  %1403 = vmatpush1.msra.mxu0 0.0
  %1404 = vmatprep.subr.mxu0 0.0
  %1405 = vmatpush1.msra.mxu0 0.0
  %1406 = vmatprep.subr.mxu0 0.0
  %1407 = vmatpush1.msra.mxu0 0.0
  %1408 = vmatprep.subr.mxu0 0.0
  %1409 = vmatpush1.msra.mxu0 0.0
  %1410 = vmatprep.subr.mxu0 0.0
  %1411 = vmatpush1.msra.mxu0 0.0
  %1412 = vmatprep.subr.mxu0 0.0
  %1413 = vmatpush1.msra.mxu0 0.0
  %1414 = vmatprep.subr.mxu0 0.0
  %1415 = vmatpush1.msra.mxu0 0.0
  %1416 = vmatprep.subr.mxu0 0.0
  %1417 = vmatpush1.msra.mxu0 0.0
  %1418 = vmatprep.subr.mxu0 0.0
  %1419 = vmatpush1.msra.mxu0 0.0
  %1420 = vmatprep.subr.mxu0 0.0
  %1421 = vmatpush1.msra.mxu0 0.0
  %1422 = vmatprep.subr.mxu0 0.0
  %1423 = vmatpush1.msra.mxu0 0.0
  %1424 = vmatprep.subr.mxu0 0.0
  %1425 = vmatpush1.msra.mxu0 0.0
  %1426 = vmatprep.subr.mxu0 0.0
  %1427 = vmatpush1.msra.mxu0 0.0
  %1428 = vmatprep.subr.mxu0 0.0
  %1429 = vmatpush1.msra.mxu0 0.0
  %1430 = vmatprep.subr.mxu0 0.0
  %1431 = vmatpush1.msra.mxu0 0.0
  %1432 = vmatprep.subr.mxu0 0.0
  %1433 = vmatpush1.msra.mxu0 0.0
  %1434 = vmatprep.subr.mxu0 0.0
  %1435 = vmatpush1.msra.mxu0 0.0
  %1436 = vmatprep.subr.mxu0 0.0
  %1437 = vmatpush1.msra.mxu0 0.0
  %1438 = vmatprep.subr.mxu0 0.0
  %1439 = vmatpush1.msra.mxu0 0.0
  %1440 = vmatprep.subr.mxu0 0.0
  %1441 = vmatpush1.msra.mxu0 0.0
  %1442 = vmatprep.subr.mxu0 0.0
  %1443 = vmatpush1.msra.mxu0 0.0
  %1444 = vmatprep.subr.mxu0 0.0
  %1445 = vmatpush1.msra.mxu0 0.0
  %1446 = vmatprep.subr.mxu0 0.0
  %1447 = vmatpush1.msra.mxu0 0.0
  %1448 = vmatprep.subr.mxu0 0.0
  %1449 = vmatpush1.msra.mxu0 0.0
  %1450 = vmatprep.subr.mxu0 0.0
  %1451 = vmatpush1.msra.mxu0 0.0
  %1452 = vmatprep.subr.mxu0 0.0
  %1453 = vmatpush1.msra.mxu0 0.0
  %1454 = vmatprep.subr.mxu0 0.0
  %1455 = vmatpush1.msra.mxu0 0.0
  %1456 = vmatprep.mubr.f32.mxu0 0.0
  %1457 = vmatmul.mubr.f32.gmra.mrb[0].mxu0 %v1388
  %v1458 = vpop.f32.mrb[0].mxu0
  %v1459 = vadd.f32 0.0, %v1458
  %v1460 = vpop.f32.mrb[0].mxu0
  %v1461 = vadd.f32 0.0, %v1460
  %1462 = vmatprep.mubr.f32.mxu0 0.0
  %1463 = vmatmul.mubr.f32.gmra.mrb[0].mxu0 %v1390
  %v1464 = vpop.f32.mrb[0].mxu0
  %v1465 = vadd.f32 0.0, %v1464
  %v1466 = vpop.f32.mrb[0].mxu0
  %v1467 = vadd.f32 0.0, %v1466
  %1468 = vdwg.mxu0
  %1469 = vmatprep.subr.mxu0 %v1381
  %1470 = vmatpush1.msra.mxu0 %v1380
  %1471 = vmatprep.subr.mxu0 %v1383
  %1472 = vmatpush1.msra.mxu0 %v1382
  %1473 = vmatprep.subr.mxu0 0.0
  %1474 = vmatpush1.msra.mxu0 0.0
  %1475 = vmatprep.subr.mxu0 0.0
  %1476 = vmatpush1.msra.mxu0 0.0
  %1477 = vmatprep.subr.mxu0 0.0
  %1478 = vmatpush1.msra.mxu0 0.0
  %1479 = vmatprep.subr.mxu0 0.0
  %1480 = vmatpush1.msra.mxu0 0.0
  %1481 = vmatprep.subr.mxu0 0.0
  %1482 = vmatpush1.msra.mxu0 0.0
  %1483 = vmatprep.subr.mxu0 0.0
  %1484 = vmatpush1.msra.mxu0 0.0
  %1485 = vmatprep.subr.mxu0 0.0
  %1486 = vmatpush1.msra.mxu0 0.0
  %1487 = vmatprep.subr.mxu0 0.0
  %1488 = vmatpush1.msra.mxu0 0.0
  %1489 = vmatprep.subr.mxu0 0.0
  %1490 = vmatpush1.msra.mxu0 0.0
  %1491 = vmatprep.subr.mxu0 0.0
  %1492 = vmatpush1.msra.mxu0 0.0
  %1493 = vmatprep.subr.mxu0 0.0
  %1494 = vmatpush1.msra.mxu0 0.0
  %1495 = vmatprep.subr.mxu0 0.0
  %1496 = vmatpush1.msra.mxu0 0.0
  %1497 = vmatprep.subr.mxu0 0.0
  %1498 = vmatpush1.msra.mxu0 0.0
  %1499 = vmatprep.subr.mxu0 0.0
  %1500 = vmatpush1.msra.mxu0 0.0
  %1501 = vmatprep.subr.mxu0 0.0
  %1502 = vmatpush1.msra.mxu0 0.0
  %1503 = vmatprep.subr.mxu0 0.0
  %1504 = vmatpush1.msra.mxu0 0.0
  %1505 = vmatprep.subr.mxu0 0.0
  %1506 = vmatpush1.msra.mxu0 0.0
  %1507 = vmatprep.subr.mxu0 0.0
  %1508 = vmatpush1.msra.mxu0 0.0
  %1509 = vmatprep.subr.mxu0 0.0
  %1510 = vmatpush1.msra.mxu0 0.0
  %1511 = vmatprep.subr.mxu0 0.0
  %1512 = vmatpush1.msra.mxu0 0.0
  %1513 = vmatprep.subr.mxu0 0.0
  %1514 = vmatpush1.msra.mxu0 0.0
  %1515 = vmatprep.subr.mxu0 0.0
  %1516 = vmatpush1.msra.mxu0 0.0
  %1517 = vmatprep.subr.mxu0 0.0
  %1518 = vmatpush1.msra.mxu0 0.0
  %1519 = vmatprep.subr.mxu0 0.0
  %1520 = vmatpush1.msra.mxu0 0.0
  %1521 = vmatprep.subr.mxu0 0.0
  %1522 = vmatpush1.msra.mxu0 0.0
  %1523 = vmatprep.subr.mxu0 0.0
  %1524 = vmatpush1.msra.mxu0 0.0
  %1525 = vmatprep.subr.mxu0 0.0
  %1526 = vmatpush1.msra.mxu0 0.0
  %1527 = vmatprep.subr.mxu0 0.0
  %1528 = vmatpush1.msra.mxu0 0.0
  %1529 = vmatprep.subr.mxu0 0.0
  %1530 = vmatpush1.msra.mxu0 0.0
  %1531 = vmatprep.subr.mxu0 0.0
  %1532 = vmatpush1.msra.mxu0 0.0
  %1533 = vmatprep.mubr.f32.mxu0 0.0
  %1534 = vmatmul.mubr.f32.gmra.mrb[0].mxu0 %v1388
  %v1535 = vpop.f32.mrb[0].mxu0
  %v1536 = vadd.f32 0.0, %v1535
  %v1537 = vpop.f32.mrb[0].mxu0
  %v1538 = vadd.f32 0.0, %v1537
  %1539 = vmatprep.mubr.f32.mxu0 0.0
  %1540 = vmatmul.mubr.f32.gmra.mrb[0].mxu0 %v1390
  %v1541 = vpop.f32.mrb[0].mxu0
  %v1542 = vadd.f32 0.0, %v1541
  %v1543 = vpop.f32.mrb[0].mxu0
  %v1544 = vadd.f32 0.0, %v1543
  %1545 = vdwg.mxu0
  %v1546 = vmul.f32 %v1459, %v1459
  %v1547 = vmul.f32 %v1461, %v1461
  %v1548 = vmul.f32 %v1465, %v1465
  %v1549 = vmul.f32 %v1467, %v1467
  %v1550 = vmul.f32 %v1536, %v1536
  %v1551 = vmul.f32 %v1538, %v1538
  %v1552 = vmul.f32 %v1542, %v1542
  %v1553 = vmul.f32 %v1544, %v1544
  %v1554 = vadd.f32 %v1546, %v1550
  %v1555 = vadd.f32 %v1547, %v1551
  %v1556 = vadd.f32 %v1548, %v1552
  %v1557 = vadd.f32 %v1549, %v1553
  %v1558 = vld [vmem:[%s2] sm:$0x3]
  %v1560 = vsel %vm1201, %v1558, 0
  %1562 = vmatprep.subr.mxu0 %v1555
  %1563 = vmatpush1.msra.mxu0 %v1554
  %1564 = vmatprep.subr.mxu0 %v1557
  %1565 = vmatpush1.msra.mxu0 %v1556
  %1566 = vmatprep.subr.mxu0 0.0
  %1567 = vmatpush1.msra.mxu0 0.0
  %1568 = vmatprep.subr.mxu0 0.0
  %1569 = vmatpush1.msra.mxu0 0.0
  %1570 = vmatprep.subr.mxu0 0.0
  %1571 = vmatpush1.msra.mxu0 0.0
  %1572 = vmatprep.subr.mxu0 0.0
  %1573 = vmatpush1.msra.mxu0 0.0
  %1574 = vmatprep.subr.mxu0 0.0
  %1575 = vmatpush1.msra.mxu0 0.0
  %1576 = vmatprep.subr.mxu0 0.0
  %1577 = vmatpush1.msra.mxu0 0.0
  %1578 = vmatprep.subr.mxu0 0.0
  %1579 = vmatpush1.msra.mxu0 0.0
  %1580 = vmatprep.subr.mxu0 0.0
  %1581 = vmatpush1.msra.mxu0 0.0
  %1582 = vmatprep.subr.mxu0 0.0
  %1583 = vmatpush1.msra.mxu0 0.0
  %1584 = vmatprep.subr.mxu0 0.0
  %1585 = vmatpush1.msra.mxu0 0.0
  %1586 = vmatprep.subr.mxu0 0.0
  %1587 = vmatpush1.msra.mxu0 0.0
  %1588 = vmatprep.subr.mxu0 0.0
  %1589 = vmatpush1.msra.mxu0 0.0
  %1590 = vmatprep.subr.mxu0 0.0
  %1591 = vmatpush1.msra.mxu0 0.0
  %1592 = vmatprep.subr.mxu0 0.0
  %1593 = vmatpush1.msra.mxu0 0.0
  %1594 = vmatprep.subr.mxu0 0.0
  %1595 = vmatpush1.msra.mxu0 0.0
  %1596 = vmatprep.subr.mxu0 0.0
  %1597 = vmatpush1.msra.mxu0 0.0
  %1598 = vmatprep.subr.mxu0 0.0
  %1599 = vmatpush1.msra.mxu0 0.0
  %1600 = vmatprep.subr.mxu0 0.0
  %1601 = vmatpush1.msra.mxu0 0.0
  %1602 = vmatprep.subr.mxu0 0.0
  %1603 = vmatpush1.msra.mxu0 0.0
  %1604 = vmatprep.subr.mxu0 0.0
  %1605 = vmatpush1.msra.mxu0 0.0
  %1606 = vmatprep.subr.mxu0 0.0
  %1607 = vmatpush1.msra.mxu0 0.0
  %1608 = vmatprep.subr.mxu0 0.0
  %1609 = vmatpush1.msra.mxu0 0.0
  %1610 = vmatprep.subr.mxu0 0.0
  %1611 = vmatpush1.msra.mxu0 0.0
  %1612 = vmatprep.subr.mxu0 0.0
  %1613 = vmatpush1.msra.mxu0 0.0
  %1614 = vmatprep.subr.mxu0 0.0
  %1615 = vmatpush1.msra.mxu0 0.0
  %1616 = vmatprep.subr.mxu0 0.0
  %1617 = vmatpush1.msra.mxu0 0.0
  %1618 = vmatprep.subr.mxu0 0.0
  %1619 = vmatpush1.msra.mxu0 0.0
  %1620 = vmatprep.subr.mxu0 0.0
  %1621 = vmatpush1.msra.mxu0 0.0
  %1622 = vmatprep.subr.mxu0 0.0
  %1623 = vmatpush1.msra.mxu0 0.0
  %1624 = vmatprep.subr.mxu0 0.0
  %1625 = vmatpush1.msra.mxu0 0.0
  %1626 = vmatprep.mubr.f32.mxu0 0.0
  %1627 = vmatmul.mubr.f32.gmra.mrb[0].mxu0 %v1560
  %v1628 = vpop.f32.mrb[0].mxu0
  %v1629 = vadd.f32 0.0, %v1628
  %v1630 = vpop.f32.mrb[0].mxu0
  %v1631 = vadd.f32 0.0, %v1630
  %1632 = vdwg.mxu0
  %v1635 = vcombine.low %v1629, %v1631
  %v1637 = vunpack.c.l.s4 1983009808
  %v1638 = vunpack.c.0.s8 %v1637
  %v1639 = vlaneseq
  %v1640 = vshrl.u32 %v1639, 7
  %v1641 = vsub.s32 %v1638, %v1640
  %v1642 = vrot.slane %v1635, %v1641
  %1644 = vst [vmem:[%s3] sm:$0xf] %v1642
  // Predicated region
  $region14: #{qnn_forward.1} parent=0 // pred_check
    _
  $region15: #{qnn_forward.1} parent=0 // pred_check_branch
    %1646 = sbr.rel (0) target = $region17
  $region16: #{qnn_forward.1} parent=0 // pred_region
    _
  $region17: #{qnn_forward.1} parent=0 // pred_fallthru
    _
  // Predicated region
  $region18: #{qnn_forward.1} parent=0 // pred_check
    _
  $region19: #{qnn_forward.1} parent=0 // pred_check_branch
    %1648 = sbr.rel (0) target = $region21
  $region20: #{qnn_forward.1} parent=0 // pred_region
    _
  $region21: #{qnn_forward.1} parent=0 // pred_fallthru
    _

</llo_original>
